<compile_context>
chip_gen: v5e
topology: v5e:2x2
jax: 0.10.0
libtpu: 0.0.40
codegen_flags: <defaults>
</compile_context>

<pallas_src>
import math

import jax
import jax.numpy as jnp
import numpy as np
from jax import lax
from jax.experimental import pallas as pl
from jax.experimental.pallas import tpu as pltpu


# ----------------------------------------------------------------------------
# Pallas kernel (fused: L x LSTM layer -> ReLU -> Linear, wavefront-pipelined)
# ----------------------------------------------------------------------------
def _make_fused_kernel(L, B, T, H):
    G = 4 * H

    def kernel(x_ref, h0_ref, c0_ref, wih0_ref, wrec_ref, ball_ref,
               wlin_ref, blin_ref, out_ref, hN_ref, cN_ref):
        # ---- hoisted layer-0 input projection: ONE matmul for all timesteps.
        b_all = ball_ref[...]                                       # (L, 4H) f32
        gates_in0 = (jnp.dot(x_ref[...], wih0_ref[...],
                             preferred_element_type=jnp.float32)
                     + b_all[0:1, :])                                # (T*B, 4H)
        wrec = wrec_ref[...]                                         # (K, L*4H) bf16

        h = [h0_ref[l] for l in range(L)]                            # (B, H) f32
        c = [c0_ref[l] for l in range(L)]
        # feed[l] = output of layer l-1 at the timestep layer l processes next.
        feed = {l: jnp.zeros((B, H), jnp.float32) for l in range(1, L)}
        ys = [None] * T

        # ---- wavefront recurrence: step s computes layer l at t = s - l.
        for s in range(T + L - 1):
            # Packed block-diagonal recurrent matmul using *previous-step* state.
            parts = [h[0]]
            for l in range(1, L):
                parts += [feed[l], h[l]]
            lhs = parts[0] if len(parts) == 1 else jnp.concatenate(parts, axis=1)
            gates_all = jnp.dot(lhs.astype(jnp.bfloat16), wrec,
                                preferred_element_type=jnp.float32)  # (B, L*4H)

            new_h = {}
            for l in range(L):
                t = s - l
                if t < 0 or t >= T:
                    continue                                # layer idle this step
                g = gates_all[:, l * G:(l + 1) * G]
                if l == 0:
                    g = g + gates_in0[t * B:(t + 1) * B, :]  # contiguous slab
                else:
                    g = g + b_all[l:l + 1, :]
                # i/f/o columns were pre-scaled by 0.5, so one tanh gives
                # tanh(z/2); sigmoid(z) = 0.5*tanh(z/2) + 0.5 (VPU fixup).
                tg = jnp.tanh(g)                             # single EUP push
                sig = 0.5 * tg[:, :3 * H] + 0.5
                i_g = sig[:, 0 * H:1 * H]
                f_g = sig[:, 1 * H:2 * H]
                o_g = sig[:, 2 * H:3 * H]
                g_g = tg[:, 3 * H:]
                c[l] = f_g * c[l] + i_g * g_g
                h[l] = o_g * jnp.tanh(c[l])
                new_h[l] = h[l]
                if l == L - 1:
                    ys[t] = h[l]
            # Propagate freshly produced outputs one layer down for next step.
            for l in range(1, L):
                if (l - 1) in new_h:
                    feed[l] = new_h[l - 1]

        hN_ref[...] = jnp.stack(h, axis=0).astype(hN_ref.dtype)
        cN_ref[...] = jnp.stack(c, axis=0).astype(cN_ref.dtype)

        # ---- ReLU + Linear head: one matmul over all rows, lane-dense store.
        y = jnp.maximum(jnp.concatenate(ys, axis=0), 0.0)            # (T*B, H)
        out = (jnp.dot(y, wlin_ref[...], preferred_element_type=jnp.float32)
               + blin_ref[...])
        out_ref[...] = out.astype(out_ref.dtype)

    return kernel


# ----------------------------------------------------------------------------
# Wrapper
# ----------------------------------------------------------------------------
def lstm_encoder_fused(params, x, hidden=None):
    """x: (B, T, D) batch-first. Returns (out (B,T,O), (h_n, c_n) each (L,B,H))."""
    B, T, D = x.shape
    L, H, O, OP = params["L"], params["H"], params["O"], params["OP"]

    if hidden is None:
        h0 = jnp.zeros((L, B, H), jnp.float32)
        c0 = jnp.zeros((L, B, H), jnp.float32)
    else:
        h0, c0 = hidden
        h0 = h0.astype(jnp.float32)
        c0 = c0.astype(jnp.float32)

    # Time-major flatten: row index = t*B + b (tiny XLA transpose, off the
    # kernel's serial critical path).
    x2d = jnp.transpose(x, (1, 0, 2)).reshape(T * B, D).astype(jnp.float32)

    inputs = [x2d, h0, c0, params["w_ih0"], params["w_rec"], params["b_all"],
              params["w_lin_pad"], params["b_lin_pad"]]

    out2d, h_n, c_n = pl.pallas_call(
        _make_fused_kernel(L, B, T, H),
        out_shape=(jax.ShapeDtypeStruct((T * B, OP), jnp.float32),
                   jax.ShapeDtypeStruct((L, B, H), jnp.float32),
                   jax.ShapeDtypeStruct((L, B, H), jnp.float32)),
        in_specs=[pl.BlockSpec(memory_space=pltpu.MemorySpace.VMEM)
                  for _ in inputs],
        out_specs=(pl.BlockSpec(memory_space=pltpu.MemorySpace.VMEM),
                   pl.BlockSpec(memory_space=pltpu.MemorySpace.VMEM),
                   pl.BlockSpec(memory_space=pltpu.MemorySpace.VMEM)),
    )(*inputs)

    out = jnp.transpose(out2d[:, :O].reshape(T, B, O), (1, 0, 2))
    return out, (h_n, c_n)


def _permute_scale_gate_cols(m):
    """PyTorch gate cols [i,f,g,o] -> kernel order [i,f,o,g], with i/f/o halved
    so a single tanh computes tanh(z/2) (sigmoid(z) = 0.5*tanh(z/2) + 0.5)."""
    i, f, g, o = jnp.split(m, 4, axis=-1)
    return jnp.concatenate([0.5 * i, 0.5 * f, 0.5 * o, g], axis=-1)


class LSTMEncoderPallas:
    """JAX/Pallas port of LSTMEncoder (batch_first=True)."""

    def __init__(self, ns, na, latent_dim, hs=32, num_layers=2,
                 cov_type='diag', key=None):
        self.ns, self.na = ns, na
        self.latent_dim = latent_dim
        self.hs = hs
        self.layers = num_layers
        self.input_dim = 2 * ns + na + 1
        if cov_type == 'diag':
            out_dim = 2 * latent_dim
        elif cov_type == 'scalar':
            out_dim = latent_dim + 1
        elif cov_type == 'fixed':
            out_dim = latent_dim
        elif cov_type == 'dense':
            # TODO(synk): PyTorch spec uses float division here; use integer dim.
            out_dim = latent_dim + latent_dim * (latent_dim + 1) // 2
        else:
            raise ValueError('invalid covariance type')
        self.out_dim = out_dim

        key = jax.random.PRNGKey(0) if key is None else key
        k = 1.0 / np.sqrt(hs)
        H, L, G = hs, num_layers, 4 * hs
        K = H + 2 * H * (L - 1)

        # ref_params: PyTorch gate order [i,f,g,o] (pure-JAX reference).
        self.ref_params = {"lstm": [], "linear": {}}
        w_rec_np = np.zeros((K, L * G), np.float32)
        b_rows = []
        w_ih0_scaled = None
        for layer in range(L):
            d_in = self.input_dim if layer == 0 else hs
            key, k1, k2, k3, k4 = jax.random.split(key, 5)
            w_ih = jax.random.uniform(k1, (G, d_in), jnp.float32, -k, k)
            w_hh = jax.random.uniform(k2, (G, hs), jnp.float32, -k, k)
            b_ih = jax.random.uniform(k3, (G,), jnp.float32, -k, k)
            b_hh = jax.random.uniform(k4, (G,), jnp.float32, -k, k)
            w_ih_t = w_ih.T                       # (d_in, 4H)
            w_hh_t = w_hh.T                       # (H, 4H)
            b = (b_ih + b_hh)[None, :]            # (1, 4H)
            self.ref_params["lstm"].append(
                {"w_ih_t": w_ih_t, "w_hh_t": w_hh_t, "b": b})

            # Kernel layout: permuted [i,f,o,g], i/f/o columns halved.
            w_ih_s = _permute_scale_gate_cols(w_ih_t)
            w_hh_s = _permute_scale_gate_cols(w_hh_t)
            b_s = _permute_scale_gate_cols(b)
            b_rows.append(b_s[0])
            if layer == 0:
                w_ih0_scaled = w_ih_s
                w_rec_np[0:H, 0:G] = np.asarray(w_hh_s)
            else:
                r = H + 2 * H * (layer - 1)
                w_rec_np[r:r + H, layer * G:(layer + 1) * G] = np.asarray(w_ih_s)
                w_rec_np[r + H:r + 2 * H, layer * G:(layer + 1) * G] = np.asarray(w_hh_s)

        key, k1, k2 = jax.random.split(key, 3)
        kl = 1.0 / np.sqrt(hs)
        w_lin = jax.random.uniform(k1, (out_dim, hs), jnp.float32, -kl, kl)
        b_lin = jax.random.uniform(k2, (out_dim,), jnp.float32, -kl, kl)
        self.ref_params["linear"] = {"w_t": w_lin.T, "b": b_lin[None, :]}

        OP = max(128, int(math.ceil(out_dim / 128)) * 128)   # lane-dense output
        w_lin_pad = jnp.zeros((hs, OP), jnp.float32).at[:, :out_dim].set(w_lin.T)
        b_lin_pad = jnp.zeros((1, OP), jnp.float32).at[:, :out_dim].set(b_lin[None, :])

        self.params = {
            "L": L, "H": H, "O": out_dim, "OP": OP,
            "w_ih0": w_ih0_scaled,                                  # (D, 4H)  f32
            "w_rec": jnp.asarray(w_rec_np, jnp.bfloat16),           # (K, L*4H) bf16
            "b_all": jnp.stack(b_rows, axis=0),                     # (L, 4H)  f32
            "w_lin_pad": w_lin_pad,                                 # (H, OP)  f32
            "b_lin_pad": b_lin_pad,                                 # (1, OP)  f32
        }

    def __call__(self, x, hidden=None):
        return lstm_encoder_fused(self.params, x, hidden)


# ----------------------------------------------------------------------------
# Pure-JAX reference (PyTorch semantics, f32, unpermuted gates) for correctness.
# ----------------------------------------------------------------------------
def _reference_forward(model, x, hidden=None):
    B, T, _ = x.shape
    H = model.hs
    L = model.layers
    if hidden is None:
        h0 = jnp.zeros((L, B, H), jnp.float32)
        c0 = jnp.zeros((L, B, H), jnp.float32)
    else:
        h0, c0 = hidden
    cur = jnp.transpose(x, (1, 0, 2))             # (T, B, D)
    h_fin, c_fin = [], []
    for layer in range(L):
        p = model.ref_params["lstm"][layer]

        def step(carry, x_t, p=p):
            h, c = carry
            gates = x_t @ p["w_ih_t"] + h @ p["w_hh_t"] + p["b"]
            i = jax.nn.sigmoid(gates[:, 0 * H:1 * H])
            f = jax.nn.sigmoid(gates[:, 1 * H:2 * H])
            g = jnp.tanh(gates[:, 2 * H:3 * H])
            o = jax.nn.sigmoid(gates[:, 3 * H:4 * H])
            c_new = f * c + i * g
            h_new = o * jnp.tanh(c_new)
            return (h_new, c_new), h_new

        (h_T, c_T), ys = lax.scan(step, (h0[layer], c0[layer]), cur)
        cur = ys
        h_fin.append(h_T)
        c_fin.append(c_T)
    y = (jnp.maximum(cur, 0.0) @ model.ref_params["linear"]["w_t"]
         + model.ref_params["linear"]["b"])
    return (jnp.transpose(y, (1, 0, 2)),
            (jnp.stack(h_fin, 0), jnp.stack(c_fin, 0)))


# ----------------------------------------------------------------------------
if __name__ == "__main__":
    # Small shapes: ns=4, na=3 -> input_dim = 2*4+3+1 = 12; hs=32; latent=8.
    ns, na, latent_dim, hs = 4, 3, 8, 32
    B, T = 2, 8

    model = LSTMEncoderPallas(ns, na, latent_dim, hs=hs, num_layers=2,
                              key=jax.random.PRNGKey(0))
    x = jax.random.normal(jax.random.PRNGKey(0), (B, T, 2 * ns + na + 1),
                          dtype=jnp.float32)

    # Recurrent matmul uses bf16 MXU operands (f32 accumulation + f32 state),
    # so compare against the f32 reference with a correspondingly looser tol.
    ATOL = RTOL = 3e-2

    # Default (zero initial hidden) path.
    out, (h_n, c_n) = model(x)
    jax.block_until_ready((out, h_n, c_n))

    ref_out, (ref_h, ref_c) = _reference_forward(model, x)
    assert out.shape == (B, T, 2 * latent_dim)
    assert h_n.shape == (2, B, hs) and c_n.shape == (2, B, hs)
    np.testing.assert_allclose(np.asarray(out), np.asarray(ref_out),
                               atol=ATOL, rtol=RTOL)
    np.testing.assert_allclose(np.asarray(h_n), np.asarray(ref_h),
                               atol=ATOL, rtol=RTOL)
    np.testing.assert_allclose(np.asarray(c_n), np.asarray(ref_c),
                               atol=ATOL, rtol=RTOL)

    # Non-zero initial hidden state path.
    kh, kc = jax.random.split(jax.random.PRNGKey(1))
    hidden = (0.1 * jax.random.normal(kh, (2, B, hs), jnp.float32),
              0.1 * jax.random.normal(kc, (2, B, hs), jnp.float32))
    out2, (h2, c2) = model(x, hidden)
    jax.block_until_ready((out2, h2, c2))
    r_out2, (r_h2, r_c2) = _reference_forward(model, x, hidden)
    np.testing.assert_allclose(np.asarray(out2), np.asarray(r_out2),
                               atol=ATOL, rtol=RTOL)
    np.testing.assert_allclose(np.asarray(h2), np.asarray(r_h2),
                               atol=ATOL, rtol=RTOL)
    np.testing.assert_allclose(np.asarray(c2), np.asarray(r_c2),
                               atol=ATOL, rtol=RTOL)

    print("KERNEL_OK")
</pallas_src>

<mosaic_0001>
module attributes {stable_mosaic.version = 11 : i64} {
  func.func @kernel(%arg0: memref<16x12xf32, #tpu.memory_space<vmem>>, %arg1: memref<2x2x32xf32, #tpu.memory_space<vmem>>, %arg2: memref<2x2x32xf32, #tpu.memory_space<vmem>>, %arg3: memref<12x128xf32, #tpu.memory_space<vmem>>, %arg4: memref<96x256xbf16, #tpu.memory_space<vmem>>, %arg5: memref<2x128xf32, #tpu.memory_space<vmem>>, %arg6: memref<32x128xf32, #tpu.memory_space<vmem>>, %arg7: memref<1x128xf32, #tpu.memory_space<vmem>>, %arg8: memref<16x128xf32, #tpu.memory_space<vmem>>, %arg9: memref<2x2x32xf32, #tpu.memory_space<vmem>>, %arg10: memref<2x2x32xf32, #tpu.memory_space<vmem>>) attributes {dimension_semantics = [], scalar_prefetch = 0 : i64, scratch_operands = 0 : i64, tpu.core_type = #tpu.core_type<tc>} {
    %c0 = arith.constant 0 : index
    %c0_0 = arith.constant 0 : index
    %0 = vector.load %arg5[%c0, %c0_0] : memref<2x128xf32, #tpu.memory_space<vmem>>, vector<2x128xf32>
    %c0_1 = arith.constant 0 : index
    %c0_2 = arith.constant 0 : index
    %1 = vector.load %arg0[%c0_1, %c0_2] : memref<16x12xf32, #tpu.memory_space<vmem>>, vector<16x12xf32>
    %c0_3 = arith.constant 0 : index
    %c0_4 = arith.constant 0 : index
    %2 = vector.load %arg3[%c0_3, %c0_4] : memref<12x128xf32, #tpu.memory_space<vmem>>, vector<12x128xf32>
    %cst = arith.constant dense<0.000000e+00> : vector<16x128xf32>
    %3 = tpu.matmul %1, %2, %cst {dimension_numbers = #tpu.dot_dimension_numbers<[1], [0], [0], [1], [0, 0, 1, 1], [], []>} : vector<16x12xf32>, vector<12x128xf32>, vector<16x128xf32> -> vector<16x128xf32>
    %4 = vector.extract_strided_slice %0 {offsets = [0, 0], sizes = [1, 128], strides = [1, 1]} : vector<2x128xf32> to vector<1x128xf32>
    %5 = vector.broadcast %4 : vector<1x128xf32> to vector<16x128xf32>
    %6 = arith.addf %3, %5 : vector<16x128xf32>
    %c0_5 = arith.constant 0 : index
    %c0_6 = arith.constant 0 : index
    %7 = vector.load %arg4[%c0_5, %c0_6] : memref<96x256xbf16, #tpu.memory_space<vmem>>, vector<96x256xbf16>
    %c0_7 = arith.constant 0 : index
    %c0_8 = arith.constant 0 : index
    %c0_9 = arith.constant 0 : index
    %8 = vector.load %arg1[%c0_7, %c0_8, %c0_9] : memref<2x2x32xf32, #tpu.memory_space<vmem>>, vector<1x2x32xf32>
    %9 = vector.shape_cast %8 : vector<1x2x32xf32> to vector<2x32xf32>
    %c1 = arith.constant 1 : index
    %c0_10 = arith.constant 0 : index
    %c0_11 = arith.constant 0 : index
    %10 = vector.load %arg1[%c1, %c0_10, %c0_11] : memref<2x2x32xf32, #tpu.memory_space<vmem>>, vector<1x2x32xf32>
    %11 = vector.shape_cast %10 : vector<1x2x32xf32> to vector<2x32xf32>
    %c0_12 = arith.constant 0 : index
    %c0_13 = arith.constant 0 : index
    %c0_14 = arith.constant 0 : index
    %12 = vector.load %arg2[%c0_12, %c0_13, %c0_14] : memref<2x2x32xf32, #tpu.memory_space<vmem>>, vector<1x2x32xf32>
    %13 = vector.shape_cast %12 : vector<1x2x32xf32> to vector<2x32xf32>
    %c1_15 = arith.constant 1 : index
    %c0_16 = arith.constant 0 : index
    %c0_17 = arith.constant 0 : index
    %14 = vector.load %arg2[%c1_15, %c0_16, %c0_17] : memref<2x2x32xf32, #tpu.memory_space<vmem>>, vector<1x2x32xf32>
    %15 = vector.shape_cast %14 : vector<1x2x32xf32> to vector<2x32xf32>
    %cst_18 = arith.constant 0.000000e+00 : f32
    %16 = vector.broadcast %cst_18 : f32 to vector<2x32xf32>
    %17 = tpu.concatenate %9, %16, %11 in 1 : vector<2x32xf32>, vector<2x32xf32>, vector<2x32xf32> -> vector<2x96xf32>
    %18 = arith.truncf %17 : vector<2x96xf32> to vector<2x96xbf16>
    %cst_19 = arith.constant dense<0.000000e+00> : vector<2x256xf32>
    %19 = tpu.matmul %18, %7, %cst_19 {dimension_numbers = #tpu.dot_dimension_numbers<[1], [0], [0], [1], [0, 0, 1, 1], [], []>} : vector<2x96xbf16>, vector<96x256xbf16>, vector<2x256xf32> -> vector<2x256xf32>
    %20 = vector.extract_strided_slice %19 {offsets = [0, 0], sizes = [2, 128], strides = [1, 1]} : vector<2x256xf32> to vector<2x128xf32>
    %21 = vector.extract_strided_slice %6 {offsets = [0, 0], sizes = [2, 128], strides = [1, 1]} : vector<16x128xf32> to vector<2x128xf32>
    %22 = arith.addf %20, %21 : vector<2x128xf32>
    %23 = math.tanh %22 : vector<2x128xf32>
    %24 = vector.extract_strided_slice %23 {offsets = [0, 0], sizes = [2, 96], strides = [1, 1]} : vector<2x128xf32> to vector<2x96xf32>
    %cst_20 = arith.constant 5.000000e-01 : f32
    %25 = vector.broadcast %cst_20 : f32 to vector<2x96xf32>
    %26 = arith.mulf %25, %24 : vector<2x96xf32>
    %cst_21 = arith.constant 5.000000e-01 : f32
    %27 = vector.broadcast %cst_21 : f32 to vector<2x96xf32>
    %28 = arith.addf %26, %27 : vector<2x96xf32>
    %29 = vector.extract_strided_slice %28 {offsets = [0, 0], sizes = [2, 32], strides = [1, 1]} : vector<2x96xf32> to vector<2x32xf32>
    %30 = vector.extract_strided_slice %28 {offsets = [0, 32], sizes = [2, 32], strides = [1, 1]} : vector<2x96xf32> to vector<2x32xf32>
    %31 = vector.extract_strided_slice %28 {offsets = [0, 64], sizes = [2, 32], strides = [1, 1]} : vector<2x96xf32> to vector<2x32xf32>
    %32 = vector.extract_strided_slice %23 {offsets = [0, 96], sizes = [2, 32], strides = [1, 1]} : vector<2x128xf32> to vector<2x32xf32>
    %33 = arith.mulf %30, %13 : vector<2x32xf32>
    %34 = arith.mulf %29, %32 : vector<2x32xf32>
    %35 = arith.addf %33, %34 : vector<2x32xf32>
    %36 = math.tanh %35 : vector<2x32xf32>
    %37 = arith.mulf %31, %36 : vector<2x32xf32>
    %38 = tpu.concatenate %37, %37, %11 in 1 : vector<2x32xf32>, vector<2x32xf32>, vector<2x32xf32> -> vector<2x96xf32>
    %39 = arith.truncf %38 : vector<2x96xf32> to vector<2x96xbf16>
    %cst_22 = arith.constant dense<0.000000e+00> : vector<2x256xf32>
    %40 = tpu.matmul %39, %7, %cst_22 {dimension_numbers = #tpu.dot_dimension_numbers<[1], [0], [0], [1], [0, 0, 1, 1], [], []>} : vector<2x96xbf16>, vector<96x256xbf16>, vector<2x256xf32> -> vector<2x256xf32>
    %41 = vector.extract_strided_slice %40 {offsets = [0, 0], sizes = [2, 128], strides = [1, 1]} : vector<2x256xf32> to vector<2x128xf32>
    %42 = vector.extract_strided_slice %6 {offsets = [2, 0], sizes = [2, 128], strides = [1, 1]} : vector<16x128xf32> to vector<2x128xf32>
    %43 = arith.addf %41, %42 : vector<2x128xf32>
    %44 = math.tanh %43 : vector<2x128xf32>
    %45 = vector.extract_strided_slice %44 {offsets = [0, 0], sizes = [2, 96], strides = [1, 1]} : vector<2x128xf32> to vector<2x96xf32>
    %cst_23 = arith.constant 5.000000e-01 : f32
    %46 = vector.broadcast %cst_23 : f32 to vector<2x96xf32>
    %47 = arith.mulf %46, %45 : vector<2x96xf32>
    %cst_24 = arith.constant 5.000000e-01 : f32
    %48 = vector.broadcast %cst_24 : f32 to vector<2x96xf32>
    %49 = arith.addf %47, %48 : vector<2x96xf32>
    %50 = vector.extract_strided_slice %49 {offsets = [0, 0], sizes = [2, 32], strides = [1, 1]} : vector<2x96xf32> to vector<2x32xf32>
    %51 = vector.extract_strided_slice %49 {offsets = [0, 32], sizes = [2, 32], strides = [1, 1]} : vector<2x96xf32> to vector<2x32xf32>
    %52 = vector.extract_strided_slice %49 {offsets = [0, 64], sizes = [2, 32], strides = [1, 1]} : vector<2x96xf32> to vector<2x32xf32>
    %53 = vector.extract_strided_slice %44 {offsets = [0, 96], sizes = [2, 32], strides = [1, 1]} : vector<2x128xf32> to vector<2x32xf32>
    %54 = arith.mulf %51, %35 : vector<2x32xf32>
    %55 = arith.mulf %50, %53 : vector<2x32xf32>
    %56 = arith.addf %54, %55 : vector<2x32xf32>
    %57 = math.tanh %56 : vector<2x32xf32>
    %58 = arith.mulf %52, %57 : vector<2x32xf32>
    %59 = vector.extract_strided_slice %40 {offsets = [0, 128], sizes = [2, 128], strides = [1, 1]} : vector<2x256xf32> to vector<2x128xf32>
    %60 = vector.extract_strided_slice %0 {offsets = [1, 0], sizes = [1, 128], strides = [1, 1]} : vector<2x128xf32> to vector<1x128xf32>
    %61 = vector.broadcast %60 : vector<1x128xf32> to vector<2x128xf32>
    %62 = arith.addf %59, %61 : vector<2x128xf32>
    %63 = math.tanh %62 : vector<2x128xf32>
    %64 = vector.extract_strided_slice %63 {offsets = [0, 0], sizes = [2, 96], strides = [1, 1]} : vector<2x128xf32> to vector<2x96xf32>
    %cst_25 = arith.constant 5.000000e-01 : f32
    %65 = vector.broadcast %cst_25 : f32 to vector<2x96xf32>
    %66 = arith.mulf %65, %64 : vector<2x96xf32>
    %cst_26 = arith.constant 5.000000e-01 : f32
    %67 = vector.broadcast %cst_26 : f32 to vector<2x96xf32>
    %68 = arith.addf %66, %67 : vector<2x96xf32>
    %69 = vector.extract_strided_slice %68 {offsets = [0, 0], sizes = [2, 32], strides = [1, 1]} : vector<2x96xf32> to vector<2x32xf32>
    %70 = vector.extract_strided_slice %68 {offsets = [0, 32], sizes = [2, 32], strides = [1, 1]} : vector<2x96xf32> to vector<2x32xf32>
    %71 = vector.extract_strided_slice %68 {offsets = [0, 64], sizes = [2, 32], strides = [1, 1]} : vector<2x96xf32> to vector<2x32xf32>
    %72 = vector.extract_strided_slice %63 {offsets = [0, 96], sizes = [2, 32], strides = [1, 1]} : vector<2x128xf32> to vector<2x32xf32>
    %73 = arith.mulf %70, %15 : vector<2x32xf32>
    %74 = arith.mulf %69, %72 : vector<2x32xf32>
    %75 = arith.addf %73, %74 : vector<2x32xf32>
    %76 = math.tanh %75 : vector<2x32xf32>
    %77 = arith.mulf %71, %76 : vector<2x32xf32>
    %78 = tpu.concatenate %58, %58, %77 in 1 : vector<2x32xf32>, vector<2x32xf32>, vector<2x32xf32> -> vector<2x96xf32>
    %79 = arith.truncf %78 : vector<2x96xf32> to vector<2x96xbf16>
    %cst_27 = arith.constant dense<0.000000e+00> : vector<2x256xf32>
    %80 = tpu.matmul %79, %7, %cst_27 {dimension_numbers = #tpu.dot_dimension_numbers<[1], [0], [0], [1], [0, 0, 1, 1], [], []>} : vector<2x96xbf16>, vector<96x256xbf16>, vector<2x256xf32> -> vector<2x256xf32>
    %81 = vector.extract_strided_slice %80 {offsets = [0, 0], sizes = [2, 128], strides = [1, 1]} : vector<2x256xf32> to vector<2x128xf32>
    %82 = vector.extract_strided_slice %6 {offsets = [4, 0], sizes = [2, 128], strides = [1, 1]} : vector<16x128xf32> to vector<2x128xf32>
    %83 = arith.addf %81, %82 : vector<2x128xf32>
    %84 = math.tanh %83 : vector<2x128xf32>
    %85 = vector.extract_strided_slice %84 {offsets = [0, 0], sizes = [2, 96], strides = [1, 1]} : vector<2x128xf32> to vector<2x96xf32>
    %cst_28 = arith.constant 5.000000e-01 : f32
    %86 = vector.broadcast %cst_28 : f32 to vector<2x96xf32>
    %87 = arith.mulf %86, %85 : vector<2x96xf32>
    %cst_29 = arith.constant 5.000000e-01 : f32
    %88 = vector.broadcast %cst_29 : f32 to vector<2x96xf32>
    %89 = arith.addf %87, %88 : vector<2x96xf32>
    %90 = vector.extract_strided_slice %89 {offsets = [0, 0], sizes = [2, 32], strides = [1, 1]} : vector<2x96xf32> to vector<2x32xf32>
    %91 = vector.extract_strided_slice %89 {offsets = [0, 32], sizes = [2, 32], strides = [1, 1]} : vector<2x96xf32> to vector<2x32xf32>
    %92 = vector.extract_strided_slice %89 {offsets = [0, 64], sizes = [2, 32], strides = [1, 1]} : vector<2x96xf32> to vector<2x32xf32>
    %93 = vector.extract_strided_slice %84 {offsets = [0, 96], sizes = [2, 32], strides = [1, 1]} : vector<2x128xf32> to vector<2x32xf32>
    %94 = arith.mulf %91, %56 : vector<2x32xf32>
    %95 = arith.mulf %90, %93 : vector<2x32xf32>
    %96 = arith.addf %94, %95 : vector<2x32xf32>
    %97 = math.tanh %96 : vector<2x32xf32>
    %98 = arith.mulf %92, %97 : vector<2x32xf32>
    %99 = vector.extract_strided_slice %80 {offsets = [0, 128], sizes = [2, 128], strides = [1, 1]} : vector<2x256xf32> to vector<2x128xf32>
    %100 = vector.extract_strided_slice %0 {offsets = [1, 0], sizes = [1, 128], strides = [1, 1]} : vector<2x128xf32> to vector<1x128xf32>
    %101 = vector.broadcast %100 : vector<1x128xf32> to vector<2x128xf32>
    %102 = arith.addf %99, %101 : vector<2x128xf32>
    %103 = math.tanh %102 : vector<2x128xf32>
    %104 = vector.extract_strided_slice %103 {offsets = [0, 0], sizes = [2, 96], strides = [1, 1]} : vector<2x128xf32> to vector<2x96xf32>
    %cst_30 = arith.constant 5.000000e-01 : f32
    %105 = vector.broadcast %cst_30 : f32 to vector<2x96xf32>
    %106 = arith.mulf %105, %104 : vector<2x96xf32>
    %cst_31 = arith.constant 5.000000e-01 : f32
    %107 = vector.broadcast %cst_31 : f32 to vector<2x96xf32>
    %108 = arith.addf %106, %107 : vector<2x96xf32>
    %109 = vector.extract_strided_slice %108 {offsets = [0, 0], sizes = [2, 32], strides = [1, 1]} : vector<2x96xf32> to vector<2x32xf32>
    %110 = vector.extract_strided_slice %108 {offsets = [0, 32], sizes = [2, 32], strides = [1, 1]} : vector<2x96xf32> to vector<2x32xf32>
    %111 = vector.extract_strided_slice %108 {offsets = [0, 64], sizes = [2, 32], strides = [1, 1]} : vector<2x96xf32> to vector<2x32xf32>
    %112 = vector.extract_strided_slice %103 {offsets = [0, 96], sizes = [2, 32], strides = [1, 1]} : vector<2x128xf32> to vector<2x32xf32>
    %113 = arith.mulf %110, %75 : vector<2x32xf32>
    %114 = arith.mulf %109, %112 : vector<2x32xf32>
    %115 = arith.addf %113, %114 : vector<2x32xf32>
    %116 = math.tanh %115 : vector<2x32xf32>
    %117 = arith.mulf %111, %116 : vector<2x32xf32>
    %118 = tpu.concatenate %98, %98, %117 in 1 : vector<2x32xf32>, vector<2x32xf32>, vector<2x32xf32> -> vector<2x96xf32>
    %119 = arith.truncf %118 : vector<2x96xf32> to vector<2x96xbf16>
    %cst_32 = arith.constant dense<0.000000e+00> : vector<2x256xf32>
    %120 = tpu.matmul %119, %7, %cst_32 {dimension_numbers = #tpu.dot_dimension_numbers<[1], [0], [0], [1], [0, 0, 1, 1], [], []>} : vector<2x96xbf16>, vector<96x256xbf16>, vector<2x256xf32> -> vector<2x256xf32>
    %121 = vector.extract_strided_slice %120 {offsets = [0, 0], sizes = [2, 128], strides = [1, 1]} : vector<2x256xf32> to vector<2x128xf32>
    %122 = vector.extract_strided_slice %6 {offsets = [6, 0], sizes = [2, 128], strides = [1, 1]} : vector<16x128xf32> to vector<2x128xf32>
    %123 = arith.addf %121, %122 : vector<2x128xf32>
    %124 = math.tanh %123 : vector<2x128xf32>
    %125 = vector.extract_strided_slice %124 {offsets = [0, 0], sizes = [2, 96], strides = [1, 1]} : vector<2x128xf32> to vector<2x96xf32>
    %cst_33 = arith.constant 5.000000e-01 : f32
    %126 = vector.broadcast %cst_33 : f32 to vector<2x96xf32>
    %127 = arith.mulf %126, %125 : vector<2x96xf32>
    %cst_34 = arith.constant 5.000000e-01 : f32
    %128 = vector.broadcast %cst_34 : f32 to vector<2x96xf32>
    %129 = arith.addf %127, %128 : vector<2x96xf32>
    %130 = vector.extract_strided_slice %129 {offsets = [0, 0], sizes = [2, 32], strides = [1, 1]} : vector<2x96xf32> to vector<2x32xf32>
    %131 = vector.extract_strided_slice %129 {offsets = [0, 32], sizes = [2, 32], strides = [1, 1]} : vector<2x96xf32> to vector<2x32xf32>
    %132 = vector.extract_strided_slice %129 {offsets = [0, 64], sizes = [2, 32], strides = [1, 1]} : vector<2x96xf32> to vector<2x32xf32>
    %133 = vector.extract_strided_slice %124 {offsets = [0, 96], sizes = [2, 32], strides = [1, 1]} : vector<2x128xf32> to vector<2x32xf32>
    %134 = arith.mulf %131, %96 : vector<2x32xf32>
    %135 = arith.mulf %130, %133 : vector<2x32xf32>
    %136 = arith.addf %134, %135 : vector<2x32xf32>
    %137 = math.tanh %136 : vector<2x32xf32>
    %138 = arith.mulf %132, %137 : vector<2x32xf32>
    %139 = vector.extract_strided_slice %120 {offsets = [0, 128], sizes = [2, 128], strides = [1, 1]} : vector<2x256xf32> to vector<2x128xf32>
    %140 = vector.extract_strided_slice %0 {offsets = [1, 0], sizes = [1, 128], strides = [1, 1]} : vector<2x128xf32> to vector<1x128xf32>
    %141 = vector.broadcast %140 : vector<1x128xf32> to vector<2x128xf32>
    %142 = arith.addf %139, %141 : vector<2x128xf32>
    %143 = math.tanh %142 : vector<2x128xf32>
    %144 = vector.extract_strided_slice %143 {offsets = [0, 0], sizes = [2, 96], strides = [1, 1]} : vector<2x128xf32> to vector<2x96xf32>
    %cst_35 = arith.constant 5.000000e-01 : f32
    %145 = vector.broadcast %cst_35 : f32 to vector<2x96xf32>
    %146 = arith.mulf %145, %144 : vector<2x96xf32>
    %cst_36 = arith.constant 5.000000e-01 : f32
    %147 = vector.broadcast %cst_36 : f32 to vector<2x96xf32>
    %148 = arith.addf %146, %147 : vector<2x96xf32>
    %149 = vector.extract_strided_slice %148 {offsets = [0, 0], sizes = [2, 32], strides = [1, 1]} : vector<2x96xf32> to vector<2x32xf32>
    %150 = vector.extract_strided_slice %148 {offsets = [0, 32], sizes = [2, 32], strides = [1, 1]} : vector<2x96xf32> to vector<2x32xf32>
    %151 = vector.extract_strided_slice %148 {offsets = [0, 64], sizes = [2, 32], strides = [1, 1]} : vector<2x96xf32> to vector<2x32xf32>
    %152 = vector.extract_strided_slice %143 {offsets = [0, 96], sizes = [2, 32], strides = [1, 1]} : vector<2x128xf32> to vector<2x32xf32>
    %153 = arith.mulf %150, %115 : vector<2x32xf32>
    %154 = arith.mulf %149, %152 : vector<2x32xf32>
    %155 = arith.addf %153, %154 : vector<2x32xf32>
    %156 = math.tanh %155 : vector<2x32xf32>
    %157 = arith.mulf %151, %156 : vector<2x32xf32>
    %158 = tpu.concatenate %138, %138, %157 in 1 : vector<2x32xf32>, vector<2x32xf32>, vector<2x32xf32> -> vector<2x96xf32>
    %159 = arith.truncf %158 : vector<2x96xf32> to vector<2x96xbf16>
    %cst_37 = arith.constant dense<0.000000e+00> : vector<2x256xf32>
    %160 = tpu.matmul %159, %7, %cst_37 {dimension_numbers = #tpu.dot_dimension_numbers<[1], [0], [0], [1], [0, 0, 1, 1], [], []>} : vector<2x96xbf16>, vector<96x256xbf16>, vector<2x256xf32> -> vector<2x256xf32>
    %161 = vector.extract_strided_slice %160 {offsets = [0, 0], sizes = [2, 128], strides = [1, 1]} : vector<2x256xf32> to vector<2x128xf32>
    %162 = vector.extract_strided_slice %6 {offsets = [8, 0], sizes = [2, 128], strides = [1, 1]} : vector<16x128xf32> to vector<2x128xf32>
    %163 = arith.addf %161, %162 : vector<2x128xf32>
    %164 = math.tanh %163 : vector<2x128xf32>
    %165 = vector.extract_strided_slice %164 {offsets = [0, 0], sizes = [2, 96], strides = [1, 1]} : vector<2x128xf32> to vector<2x96xf32>
    %cst_38 = arith.constant 5.000000e-01 : f32
    %166 = vector.broadcast %cst_38 : f32 to vector<2x96xf32>
    %167 = arith.mulf %166, %165 : vector<2x96xf32>
    %cst_39 = arith.constant 5.000000e-01 : f32
    %168 = vector.broadcast %cst_39 : f32 to vector<2x96xf32>
    %169 = arith.addf %167, %168 : vector<2x96xf32>
    %170 = vector.extract_strided_slice %169 {offsets = [0, 0], sizes = [2, 32], strides = [1, 1]} : vector<2x96xf32> to vector<2x32xf32>
    %171 = vector.extract_strided_slice %169 {offsets = [0, 32], sizes = [2, 32], strides = [1, 1]} : vector<2x96xf32> to vector<2x32xf32>
    %172 = vector.extract_strided_slice %169 {offsets = [0, 64], sizes = [2, 32], strides = [1, 1]} : vector<2x96xf32> to vector<2x32xf32>
    %173 = vector.extract_strided_slice %164 {offsets = [0, 96], sizes = [2, 32], strides = [1, 1]} : vector<2x128xf32> to vector<2x32xf32>
    %174 = arith.mulf %171, %136 : vector<2x32xf32>
    %175 = arith.mulf %170, %173 : vector<2x32xf32>
    %176 = arith.addf %174, %175 : vector<2x32xf32>
    %177 = math.tanh %176 : vector<2x32xf32>
    %178 = arith.mulf %172, %177 : vector<2x32xf32>
    %179 = vector.extract_strided_slice %160 {offsets = [0, 128], sizes = [2, 128], strides = [1, 1]} : vector<2x256xf32> to vector<2x128xf32>
    %180 = vector.extract_strided_slice %0 {offsets = [1, 0], sizes = [1, 128], strides = [1, 1]} : vector<2x128xf32> to vector<1x128xf32>
    %181 = vector.broadcast %180 : vector<1x128xf32> to vector<2x128xf32>
    %182 = arith.addf %179, %181 : vector<2x128xf32>
    %183 = math.tanh %182 : vector<2x128xf32>
    %184 = vector.extract_strided_slice %183 {offsets = [0, 0], sizes = [2, 96], strides = [1, 1]} : vector<2x128xf32> to vector<2x96xf32>
    %cst_40 = arith.constant 5.000000e-01 : f32
    %185 = vector.broadcast %cst_40 : f32 to vector<2x96xf32>
    %186 = arith.mulf %185, %184 : vector<2x96xf32>
    %cst_41 = arith.constant 5.000000e-01 : f32
    %187 = vector.broadcast %cst_41 : f32 to vector<2x96xf32>
    %188 = arith.addf %186, %187 : vector<2x96xf32>
    %189 = vector.extract_strided_slice %188 {offsets = [0, 0], sizes = [2, 32], strides = [1, 1]} : vector<2x96xf32> to vector<2x32xf32>
    %190 = vector.extract_strided_slice %188 {offsets = [0, 32], sizes = [2, 32], strides = [1, 1]} : vector<2x96xf32> to vector<2x32xf32>
    %191 = vector.extract_strided_slice %188 {offsets = [0, 64], sizes = [2, 32], strides = [1, 1]} : vector<2x96xf32> to vector<2x32xf32>
    %192 = vector.extract_strided_slice %183 {offsets = [0, 96], sizes = [2, 32], strides = [1, 1]} : vector<2x128xf32> to vector<2x32xf32>
    %193 = arith.mulf %190, %155 : vector<2x32xf32>
    %194 = arith.mulf %189, %192 : vector<2x32xf32>
    %195 = arith.addf %193, %194 : vector<2x32xf32>
    %196 = math.tanh %195 : vector<2x32xf32>
    %197 = arith.mulf %191, %196 : vector<2x32xf32>
    %198 = tpu.concatenate %178, %178, %197 in 1 : vector<2x32xf32>, vector<2x32xf32>, vector<2x32xf32> -> vector<2x96xf32>
    %199 = arith.truncf %198 : vector<2x96xf32> to vector<2x96xbf16>
    %cst_42 = arith.constant dense<0.000000e+00> : vector<2x256xf32>
    %200 = tpu.matmul %199, %7, %cst_42 {dimension_numbers = #tpu.dot_dimension_numbers<[1], [0], [0], [1], [0, 0, 1, 1], [], []>} : vector<2x96xbf16>, vector<96x256xbf16>, vector<2x256xf32> -> vector<2x256xf32>
    %201 = vector.extract_strided_slice %200 {offsets = [0, 0], sizes = [2, 128], strides = [1, 1]} : vector<2x256xf32> to vector<2x128xf32>
    %202 = vector.extract_strided_slice %6 {offsets = [10, 0], sizes = [2, 128], strides = [1, 1]} : vector<16x128xf32> to vector<2x128xf32>
    %203 = arith.addf %201, %202 : vector<2x128xf32>
    %204 = math.tanh %203 : vector<2x128xf32>
    %205 = vector.extract_strided_slice %204 {offsets = [0, 0], sizes = [2, 96], strides = [1, 1]} : vector<2x128xf32> to vector<2x96xf32>
    %cst_43 = arith.constant 5.000000e-01 : f32
    %206 = vector.broadcast %cst_43 : f32 to vector<2x96xf32>
    %207 = arith.mulf %206, %205 : vector<2x96xf32>
    %cst_44 = arith.constant 5.000000e-01 : f32
    %208 = vector.broadcast %cst_44 : f32 to vector<2x96xf32>
    %209 = arith.addf %207, %208 : vector<2x96xf32>
    %210 = vector.extract_strided_slice %209 {offsets = [0, 0], sizes = [2, 32], strides = [1, 1]} : vector<2x96xf32> to vector<2x32xf32>
    %211 = vector.extract_strided_slice %209 {offsets = [0, 32], sizes = [2, 32], strides = [1, 1]} : vector<2x96xf32> to vector<2x32xf32>
    %212 = vector.extract_strided_slice %209 {offsets = [0, 64], sizes = [2, 32], strides = [1, 1]} : vector<2x96xf32> to vector<2x32xf32>
    %213 = vector.extract_strided_slice %204 {offsets = [0, 96], sizes = [2, 32], strides = [1, 1]} : vector<2x128xf32> to vector<2x32xf32>
    %214 = arith.mulf %211, %176 : vector<2x32xf32>
    %215 = arith.mulf %210, %213 : vector<2x32xf32>
    %216 = arith.addf %214, %215 : vector<2x32xf32>
    %217 = math.tanh %216 : vector<2x32xf32>
    %218 = arith.mulf %212, %217 : vector<2x32xf32>
    %219 = vector.extract_strided_slice %200 {offsets = [0, 128], sizes = [2, 128], strides = [1, 1]} : vector<2x256xf32> to vector<2x128xf32>
    %220 = vector.extract_strided_slice %0 {offsets = [1, 0], sizes = [1, 128], strides = [1, 1]} : vector<2x128xf32> to vector<1x128xf32>
    %221 = vector.broadcast %220 : vector<1x128xf32> to vector<2x128xf32>
    %222 = arith.addf %219, %221 : vector<2x128xf32>
    %223 = math.tanh %222 : vector<2x128xf32>
    %224 = vector.extract_strided_slice %223 {offsets = [0, 0], sizes = [2, 96], strides = [1, 1]} : vector<2x128xf32> to vector<2x96xf32>
    %cst_45 = arith.constant 5.000000e-01 : f32
    %225 = vector.broadcast %cst_45 : f32 to vector<2x96xf32>
    %226 = arith.mulf %225, %224 : vector<2x96xf32>
    %cst_46 = arith.constant 5.000000e-01 : f32
    %227 = vector.broadcast %cst_46 : f32 to vector<2x96xf32>
    %228 = arith.addf %226, %227 : vector<2x96xf32>
    %229 = vector.extract_strided_slice %228 {offsets = [0, 0], sizes = [2, 32], strides = [1, 1]} : vector<2x96xf32> to vector<2x32xf32>
    %230 = vector.extract_strided_slice %228 {offsets = [0, 32], sizes = [2, 32], strides = [1, 1]} : vector<2x96xf32> to vector<2x32xf32>
    %231 = vector.extract_strided_slice %228 {offsets = [0, 64], sizes = [2, 32], strides = [1, 1]} : vector<2x96xf32> to vector<2x32xf32>
    %232 = vector.extract_strided_slice %223 {offsets = [0, 96], sizes = [2, 32], strides = [1, 1]} : vector<2x128xf32> to vector<2x32xf32>
    %233 = arith.mulf %230, %195 : vector<2x32xf32>
    %234 = arith.mulf %229, %232 : vector<2x32xf32>
    %235 = arith.addf %233, %234 : vector<2x32xf32>
    %236 = math.tanh %235 : vector<2x32xf32>
    %237 = arith.mulf %231, %236 : vector<2x32xf32>
    %238 = tpu.concatenate %218, %218, %237 in 1 : vector<2x32xf32>, vector<2x32xf32>, vector<2x32xf32> -> vector<2x96xf32>
    %239 = arith.truncf %238 : vector<2x96xf32> to vector<2x96xbf16>
    %cst_47 = arith.constant dense<0.000000e+00> : vector<2x256xf32>
    %240 = tpu.matmul %239, %7, %cst_47 {dimension_numbers = #tpu.dot_dimension_numbers<[1], [0], [0], [1], [0, 0, 1, 1], [], []>} : vector<2x96xbf16>, vector<96x256xbf16>, vector<2x256xf32> -> vector<2x256xf32>
    %241 = vector.extract_strided_slice %240 {offsets = [0, 0], sizes = [2, 128], strides = [1, 1]} : vector<2x256xf32> to vector<2x128xf32>
    %242 = vector.extract_strided_slice %6 {offsets = [12, 0], sizes = [2, 128], strides = [1, 1]} : vector<16x128xf32> to vector<2x128xf32>
    %243 = arith.addf %241, %242 : vector<2x128xf32>
    %244 = math.tanh %243 : vector<2x128xf32>
    %245 = vector.extract_strided_slice %244 {offsets = [0, 0], sizes = [2, 96], strides = [1, 1]} : vector<2x128xf32> to vector<2x96xf32>
    %cst_48 = arith.constant 5.000000e-01 : f32
    %246 = vector.broadcast %cst_48 : f32 to vector<2x96xf32>
    %247 = arith.mulf %246, %245 : vector<2x96xf32>
    %cst_49 = arith.constant 5.000000e-01 : f32
    %248 = vector.broadcast %cst_49 : f32 to vector<2x96xf32>
    %249 = arith.addf %247, %248 : vector<2x96xf32>
    %250 = vector.extract_strided_slice %249 {offsets = [0, 0], sizes = [2, 32], strides = [1, 1]} : vector<2x96xf32> to vector<2x32xf32>
    %251 = vector.extract_strided_slice %249 {offsets = [0, 32], sizes = [2, 32], strides = [1, 1]} : vector<2x96xf32> to vector<2x32xf32>
    %252 = vector.extract_strided_slice %249 {offsets = [0, 64], sizes = [2, 32], strides = [1, 1]} : vector<2x96xf32> to vector<2x32xf32>
    %253 = vector.extract_strided_slice %244 {offsets = [0, 96], sizes = [2, 32], strides = [1, 1]} : vector<2x128xf32> to vector<2x32xf32>
    %254 = arith.mulf %251, %216 : vector<2x32xf32>
    %255 = arith.mulf %250, %253 : vector<2x32xf32>
    %256 = arith.addf %254, %255 : vector<2x32xf32>
    %257 = math.tanh %256 : vector<2x32xf32>
    %258 = arith.mulf %252, %257 : vector<2x32xf32>
    %259 = vector.extract_strided_slice %240 {offsets = [0, 128], sizes = [2, 128], strides = [1, 1]} : vector<2x256xf32> to vector<2x128xf32>
    %260 = vector.extract_strided_slice %0 {offsets = [1, 0], sizes = [1, 128], strides = [1, 1]} : vector<2x128xf32> to vector<1x128xf32>
    %261 = vector.broadcast %260 : vector<1x128xf32> to vector<2x128xf32>
    %262 = arith.addf %259, %261 : vector<2x128xf32>
    %263 = math.tanh %262 : vector<2x128xf32>
    %264 = vector.extract_strided_slice %263 {offsets = [0, 0], sizes = [2, 96], strides = [1, 1]} : vector<2x128xf32> to vector<2x96xf32>
    %cst_50 = arith.constant 5.000000e-01 : f32
    %265 = vector.broadcast %cst_50 : f32 to vector<2x96xf32>
    %266 = arith.mulf %265, %264 : vector<2x96xf32>
    %cst_51 = arith.constant 5.000000e-01 : f32
    %267 = vector.broadcast %cst_51 : f32 to vector<2x96xf32>
    %268 = arith.addf %266, %267 : vector<2x96xf32>
    %269 = vector.extract_strided_slice %268 {offsets = [0, 0], sizes = [2, 32], strides = [1, 1]} : vector<2x96xf32> to vector<2x32xf32>
    %270 = vector.extract_strided_slice %268 {offsets = [0, 32], sizes = [2, 32], strides = [1, 1]} : vector<2x96xf32> to vector<2x32xf32>
    %271 = vector.extract_strided_slice %268 {offsets = [0, 64], sizes = [2, 32], strides = [1, 1]} : vector<2x96xf32> to vector<2x32xf32>
    %272 = vector.extract_strided_slice %263 {offsets = [0, 96], sizes = [2, 32], strides = [1, 1]} : vector<2x128xf32> to vector<2x32xf32>
    %273 = arith.mulf %270, %235 : vector<2x32xf32>
    %274 = arith.mulf %269, %272 : vector<2x32xf32>
    %275 = arith.addf %273, %274 : vector<2x32xf32>
    %276 = math.tanh %275 : vector<2x32xf32>
    %277 = arith.mulf %271, %276 : vector<2x32xf32>
    %278 = tpu.concatenate %258, %258, %277 in 1 : vector<2x32xf32>, vector<2x32xf32>, vector<2x32xf32> -> vector<2x96xf32>
    %279 = arith.truncf %278 : vector<2x96xf32> to vector<2x96xbf16>
    %cst_52 = arith.constant dense<0.000000e+00> : vector<2x256xf32>
    %280 = tpu.matmul %279, %7, %cst_52 {dimension_numbers = #tpu.dot_dimension_numbers<[1], [0], [0], [1], [0, 0, 1, 1], [], []>} : vector<2x96xbf16>, vector<96x256xbf16>, vector<2x256xf32> -> vector<2x256xf32>
    %281 = vector.extract_strided_slice %280 {offsets = [0, 0], sizes = [2, 128], strides = [1, 1]} : vector<2x256xf32> to vector<2x128xf32>
    %282 = vector.extract_strided_slice %6 {offsets = [14, 0], sizes = [2, 128], strides = [1, 1]} : vector<16x128xf32> to vector<2x128xf32>
    %283 = arith.addf %281, %282 : vector<2x128xf32>
    %284 = math.tanh %283 : vector<2x128xf32>
    %285 = vector.extract_strided_slice %284 {offsets = [0, 0], sizes = [2, 96], strides = [1, 1]} : vector<2x128xf32> to vector<2x96xf32>
    %cst_53 = arith.constant 5.000000e-01 : f32
    %286 = vector.broadcast %cst_53 : f32 to vector<2x96xf32>
    %287 = arith.mulf %286, %285 : vector<2x96xf32>
    %cst_54 = arith.constant 5.000000e-01 : f32
    %288 = vector.broadcast %cst_54 : f32 to vector<2x96xf32>
    %289 = arith.addf %287, %288 : vector<2x96xf32>
    %290 = vector.extract_strided_slice %289 {offsets = [0, 0], sizes = [2, 32], strides = [1, 1]} : vector<2x96xf32> to vector<2x32xf32>
    %291 = vector.extract_strided_slice %289 {offsets = [0, 32], sizes = [2, 32], strides = [1, 1]} : vector<2x96xf32> to vector<2x32xf32>
    %292 = vector.extract_strided_slice %289 {offsets = [0, 64], sizes = [2, 32], strides = [1, 1]} : vector<2x96xf32> to vector<2x32xf32>
    %293 = vector.extract_strided_slice %284 {offsets = [0, 96], sizes = [2, 32], strides = [1, 1]} : vector<2x128xf32> to vector<2x32xf32>
    %294 = arith.mulf %291, %256 : vector<2x32xf32>
    %295 = arith.mulf %290, %293 : vector<2x32xf32>
    %296 = arith.addf %294, %295 : vector<2x32xf32>
    %297 = math.tanh %296 : vector<2x32xf32>
    %298 = arith.mulf %292, %297 : vector<2x32xf32>
    %299 = vector.extract_strided_slice %280 {offsets = [0, 128], sizes = [2, 128], strides = [1, 1]} : vector<2x256xf32> to vector<2x128xf32>
    %300 = vector.extract_strided_slice %0 {offsets = [1, 0], sizes = [1, 128], strides = [1, 1]} : vector<2x128xf32> to vector<1x128xf32>
    %301 = vector.broadcast %300 : vector<1x128xf32> to vector<2x128xf32>
    %302 = arith.addf %299, %301 : vector<2x128xf32>
    %303 = math.tanh %302 : vector<2x128xf32>
    %304 = vector.extract_strided_slice %303 {offsets = [0, 0], sizes = [2, 96], strides = [1, 1]} : vector<2x128xf32> to vector<2x96xf32>
    %cst_55 = arith.constant 5.000000e-01 : f32
    %305 = vector.broadcast %cst_55 : f32 to vector<2x96xf32>
    %306 = arith.mulf %305, %304 : vector<2x96xf32>
    %cst_56 = arith.constant 5.000000e-01 : f32
    %307 = vector.broadcast %cst_56 : f32 to vector<2x96xf32>
    %308 = arith.addf %306, %307 : vector<2x96xf32>
    %309 = vector.extract_strided_slice %308 {offsets = [0, 0], sizes = [2, 32], strides = [1, 1]} : vector<2x96xf32> to vector<2x32xf32>
    %310 = vector.extract_strided_slice %308 {offsets = [0, 32], sizes = [2, 32], strides = [1, 1]} : vector<2x96xf32> to vector<2x32xf32>
    %311 = vector.extract_strided_slice %308 {offsets = [0, 64], sizes = [2, 32], strides = [1, 1]} : vector<2x96xf32> to vector<2x32xf32>
    %312 = vector.extract_strided_slice %303 {offsets = [0, 96], sizes = [2, 32], strides = [1, 1]} : vector<2x128xf32> to vector<2x32xf32>
    %313 = arith.mulf %310, %275 : vector<2x32xf32>
    %314 = arith.mulf %309, %312 : vector<2x32xf32>
    %315 = arith.addf %313, %314 : vector<2x32xf32>
    %316 = math.tanh %315 : vector<2x32xf32>
    %317 = arith.mulf %311, %316 : vector<2x32xf32>
    %318 = tpu.concatenate %298, %298, %317 in 1 : vector<2x32xf32>, vector<2x32xf32>, vector<2x32xf32> -> vector<2x96xf32>
    %319 = arith.truncf %318 : vector<2x96xf32> to vector<2x96xbf16>
    %cst_57 = arith.constant dense<0.000000e+00> : vector<2x256xf32>
    %320 = tpu.matmul %319, %7, %cst_57 {dimension_numbers = #tpu.dot_dimension_numbers<[1], [0], [0], [1], [0, 0, 1, 1], [], []>} : vector<2x96xbf16>, vector<96x256xbf16>, vector<2x256xf32> -> vector<2x256xf32>
    %321 = vector.extract_strided_slice %320 {offsets = [0, 128], sizes = [2, 128], strides = [1, 1]} : vector<2x256xf32> to vector<2x128xf32>
    %322 = vector.extract_strided_slice %0 {offsets = [1, 0], sizes = [1, 128], strides = [1, 1]} : vector<2x128xf32> to vector<1x128xf32>
    %323 = vector.broadcast %322 : vector<1x128xf32> to vector<2x128xf32>
    %324 = arith.addf %321, %323 : vector<2x128xf32>
    %325 = math.tanh %324 : vector<2x128xf32>
    %326 = vector.extract_strided_slice %325 {offsets = [0, 0], sizes = [2, 96], strides = [1, 1]} : vector<2x128xf32> to vector<2x96xf32>
    %cst_58 = arith.constant 5.000000e-01 : f32
    %327 = vector.broadcast %cst_58 : f32 to vector<2x96xf32>
    %328 = arith.mulf %327, %326 : vector<2x96xf32>
    %cst_59 = arith.constant 5.000000e-01 : f32
    %329 = vector.broadcast %cst_59 : f32 to vector<2x96xf32>
    %330 = arith.addf %328, %329 : vector<2x96xf32>
    %331 = vector.extract_strided_slice %330 {offsets = [0, 0], sizes = [2, 32], strides = [1, 1]} : vector<2x96xf32> to vector<2x32xf32>
    %332 = vector.extract_strided_slice %330 {offsets = [0, 32], sizes = [2, 32], strides = [1, 1]} : vector<2x96xf32> to vector<2x32xf32>
    %333 = vector.extract_strided_slice %330 {offsets = [0, 64], sizes = [2, 32], strides = [1, 1]} : vector<2x96xf32> to vector<2x32xf32>
    %334 = vector.extract_strided_slice %325 {offsets = [0, 96], sizes = [2, 32], strides = [1, 1]} : vector<2x128xf32> to vector<2x32xf32>
    %335 = arith.mulf %332, %315 : vector<2x32xf32>
    %336 = arith.mulf %331, %334 : vector<2x32xf32>
    %337 = arith.addf %335, %336 : vector<2x32xf32>
    %338 = math.tanh %337 : vector<2x32xf32>
    %339 = arith.mulf %333, %338 : vector<2x32xf32>
    %340 = vector.shape_cast %298 : vector<2x32xf32> to vector<1x2x32xf32>
    %341 = vector.shape_cast %339 : vector<2x32xf32> to vector<1x2x32xf32>
    %342 = tpu.concatenate %340, %341 in 0 : vector<1x2x32xf32>, vector<1x2x32xf32> -> vector<2x2x32xf32>
    %c0_60 = arith.constant 0 : index
    %c0_61 = arith.constant 0 : index
    %c0_62 = arith.constant 0 : index
    %343 = vector.load %arg9[%c0_60, %c0_61, %c0_62] : memref<2x2x32xf32, #tpu.memory_space<vmem>>, vector<2x2x32xf32>
    tpu.vector_store %arg9[%c0_60, %c0_61, %c0_62], %342 {strides = array<i32>} : memref<2x2x32xf32, #tpu.memory_space<vmem>>, vector<2x2x32xf32>,
    %344 = vector.shape_cast %296 : vector<2x32xf32> to vector<1x2x32xf32>
    %345 = vector.shape_cast %337 : vector<2x32xf32> to vector<1x2x32xf32>
    %346 = tpu.concatenate %344, %345 in 0 : vector<1x2x32xf32>, vector<1x2x32xf32> -> vector<2x2x32xf32>
    %c0_63 = arith.constant 0 : index
    %c0_64 = arith.constant 0 : index
    %c0_65 = arith.constant 0 : index
    %347 = vector.load %arg10[%c0_63, %c0_64, %c0_65] : memref<2x2x32xf32, #tpu.memory_space<vmem>>, vector<2x2x32xf32>
    tpu.vector_store %arg10[%c0_63, %c0_64, %c0_65], %346 {strides = array<i32>} : memref<2x2x32xf32, #tpu.memory_space<vmem>>, vector<2x2x32xf32>,
    %348 = tpu.concatenate %77, %117, %157, %197, %237, %277, %317, %339 in 0 : vector<2x32xf32>, vector<2x32xf32>, vector<2x32xf32>, vector<2x32xf32>, vector<2x32xf32>, vector<2x32xf32>, vector<2x32xf32>, vector<2x32xf32> -> vector<16x32xf32>
    %cst_66 = arith.constant 0.000000e+00 : f32
    %349 = vector.broadcast %cst_66 : f32 to vector<16x32xf32>
    %350 = arith.maximumf %348, %349 : vector<16x32xf32>
    %c0_67 = arith.constant 0 : index
    %c0_68 = arith.constant 0 : index
    %351 = vector.load %arg6[%c0_67, %c0_68] : memref<32x128xf32, #tpu.memory_space<vmem>>, vector<32x128xf32>
    %cst_69 = arith.constant dense<0.000000e+00> : vector<16x128xf32>
    %352 = tpu.matmul %350, %351, %cst_69 {dimension_numbers = #tpu.dot_dimension_numbers<[1], [0], [0], [1], [0, 0, 1, 1], [], []>} : vector<16x32xf32>, vector<32x128xf32>, vector<16x128xf32> -> vector<16x128xf32>
    %c0_70 = arith.constant 0 : index
    %c0_71 = arith.constant 0 : index
    %353 = vector.load %arg7[%c0_70, %c0_71] : memref<1x128xf32, #tpu.memory_space<vmem>>, vector<1x128xf32>
    %354 = vector.broadcast %353 : vector<1x128xf32> to vector<16x128xf32>
    %355 = arith.addf %352, %354 : vector<16x128xf32>
    %c0_72 = arith.constant 0 : index
    %c0_73 = arith.constant 0 : index
    %356 = vector.load %arg8[%c0_72, %c0_73] : memref<16x128xf32, #tpu.memory_space<vmem>>, vector<16x128xf32>
    tpu.vector_store %arg8[%c0_72, %c0_73], %355 {strides = array<i32>} : memref<16x128xf32, #tpu.memory_space<vmem>>, vector<16x128xf32>,
    return
  }
}

</mosaic_0001>

<llo_original>
// kernel: tpu_custom_call.1
$region0: #{tpu_custom_call.1}
  #allocation0 [shape = 'u32[]', space=smem, size = 0x4, offset = 0x4, fixed_abs, tag = 'smem constant byte address 0x4 - core index']
  #allocation1 [shape = 'u32[72,128]{1,0:T(1,128)}', space=vmem, size = 0x9000, scoped, tag = 'internal scratch']
  %s0 = inlined_call_operand.hbm [shape: f32[16,12], index: 0, kind: input, shape index: {}]
  %s1 = inlined_call_operand.hbm [shape: f32[2,2,32], index: 1, kind: input, shape index: {}]
  %s2 = inlined_call_operand.hbm [shape: f32[2,2,32], index: 2, kind: input, shape index: {}]
  %s3 = inlined_call_operand.hbm [shape: f32[12,128], index: 3, kind: input, shape index: {}]
  %s4 = inlined_call_operand.hbm [shape: bf16[96,256], index: 4, kind: input, shape index: {}]
  %s5 = inlined_call_operand.vmem [shape: f32[2,128], index: 5, kind: input, shape index: {}]
  %s6 = inlined_call_operand.hbm [shape: f32[32,128], index: 6, kind: input, shape index: {}]
  %s7 = inlined_call_operand.vmem [shape: f32[1,128], index: 7, kind: input, shape index: {}]
  %s8 = inlined_call_operand.hbm [shape: f32[16,128], index: 8, kind: output, shape index: {0}]
  %s9 = inlined_call_operand.hbm [shape: f32[2,2,32], index: 9, kind: output, shape index: {1}]
  %s10 = inlined_call_operand.hbm [shape: f32[2,2,32], index: 10, kind: output, shape index: {2}]
  %11 = xla_tuple %s8, %s9, %s10
  %s12 = sld [smem:[#allocation0]]
  $region82: #{tpu_custom_call.1} parent=0
    _
  %s14 = ssub.s32 1, %s12
  %s15 = scalar_select 0, %s14, %s12
  $region1: #{tpu_custom_call.1} parent=0
    #allocation2 [shape = 'u8[8192]{0}', space=vmem, size = 0x2000, scoped, tag = 'input window, operand 0, single buffered']
    #allocation3 [shape = 's32[1]{0}', space=sflag, size = 0x4, scoped, tag = 'scoped memory for tpu_custom_call.1']
    #allocation4 [shape = 's32[1]{0}', space=sflag, size = 0x4, scoped, tag = 'scoped memory for tpu_custom_call.1']
    #allocation5 [shape = 'u8[2048]{0}', space=vmem, size = 0x800, scoped, tag = 'input window, operand 1, single buffered']
    #allocation6 [shape = 's32[1]{0}', space=sflag, size = 0x4, scoped, tag = 'scoped memory for tpu_custom_call.1']
    #allocation7 [shape = 'u8[2048]{0}', space=vmem, size = 0x800, scoped, tag = 'input window, operand 2, single buffered']
    #allocation8 [shape = 'u8[8192]{0}', space=vmem, size = 0x2000, scoped, tag = 'input window, operand 3, single buffered']
    #allocation9 [shape = 's32[1]{0}', space=sflag, size = 0x4, scoped, tag = 'scoped memory for tpu_custom_call.1']
    #allocation10 [shape = 'u8[49152]{0}', space=vmem, size = 0xc000, scoped, tag = 'input window, operand 4, single buffered']
    #allocation11 [shape = 'u8[16384]{0}', space=vmem, size = 0x4000, scoped, tag = 'input window, operand 6, single buffered']
    #allocation12 [shape = 's32[1]{0}', space=sflag, size = 0x4, scoped, tag = 'scoped memory for tpu_custom_call.1']
    #allocation13 [shape = 'u8[8192]{0}', space=vmem, size = 0x2000, scoped, tag = 'output window, operand 0, single buffered']
    #allocation14 [shape = 'u8[2048]{0}', space=vmem, size = 0x800, scoped, tag = 'output window, operand 1, single buffered']
    #allocation15 [shape = 's32[1]{0}', space=sflag, size = 0x4, scoped, tag = 'scoped memory for tpu_custom_call.1']
    #allocation16 [shape = 'u8[2048]{0}', space=vmem, size = 0x800, scoped, tag = 'output window, operand 2, single buffered']
    %16 = vsyncpa [#allocation3], 0
    %17 = vsyncpa [#allocation6], 0
    %18 = vsyncpa [#allocation9], 0
    %19 = vsyncpa [#allocation12], 0
    %20 = vsyncpa [#allocation4], 0
    %21 = vsyncpa [#allocation15], 0
    // Predicated region
    $region2: #{tpu_custom_call.1} parent=1 // pred_check
      _
    $region3: #{tpu_custom_call.1} parent=1 // pred_check_branch
      %23 = sbr.rel (0) target = $region5
    $region4: #{tpu_custom_call.1} parent=1 // pred_region
      %25 = vsyncadd [#allocation3], 0
      %s26 = sshll.u32 %s0, 4
      %s27 = int_to_ptr.hbm [resolvable:$true] %s26
      %s28 = sshll.u32 [#allocation2], 4
      %s29 = int_to_ptr.vmem [resolvable:$true] %s28
      %34 = dma.hbm_to_vmem [thread:$0]  %s27, 256, %s29, [#allocation3], 128, 128, 8
    $region5: #{tpu_custom_call.1} parent=1 // pred_fallthru
      _
    // Predicated region
    $region6: #{tpu_custom_call.1} parent=1 // pred_check
      _
    $region7: #{tpu_custom_call.1} parent=1 // pred_check_branch
      %36 = sbr.rel (0) target = $region9
    $region8: #{tpu_custom_call.1} parent=1 // pred_region
      %38 = vsyncadd [#allocation6], 0
      %s39 = sshll.u32 %s1, 4
      %s40 = int_to_ptr.hbm [resolvable:$true] %s39
      %s41 = sshll.u32 [#allocation5], 4
      %s42 = int_to_ptr.vmem [resolvable:$true] %s41
      %47 = dma.hbm_to_vmem [thread:$0]  %s40, 64, %s42, [#allocation6], 32, 32, 2
    $region9: #{tpu_custom_call.1} parent=1 // pred_fallthru
      _
    // Predicated region
    $region10: #{tpu_custom_call.1} parent=1 // pred_check
      _
    $region11: #{tpu_custom_call.1} parent=1 // pred_check_branch
      %49 = sbr.rel (0) target = $region13
    $region12: #{tpu_custom_call.1} parent=1 // pred_region
      %51 = vsyncadd [#allocation6], 0
      %s52 = sshll.u32 %s2, 4
      %s53 = int_to_ptr.hbm [resolvable:$true] %s52
      %s54 = sshll.u32 [#allocation7], 4
      %s55 = int_to_ptr.vmem [resolvable:$true] %s54
      %60 = dma.hbm_to_vmem [thread:$0]  %s53, 64, %s55, [#allocation6], 32, 32, 2
    $region13: #{tpu_custom_call.1} parent=1 // pred_fallthru
      _
    // Predicated region
    $region14: #{tpu_custom_call.1} parent=1 // pred_check
      _
    $region15: #{tpu_custom_call.1} parent=1 // pred_check_branch
      %62 = sbr.rel (0) target = $region17
    $region16: #{tpu_custom_call.1} parent=1 // pred_region
      %64 = vsyncadd [#allocation9], 0
      %s65 = sshll.u32 %s3, 4
      %s66 = int_to_ptr.hbm [resolvable:$true] %s65
      %s67 = sshll.u32 [#allocation8], 4
      %s68 = int_to_ptr.vmem [resolvable:$true] %s67
      %73 = dma.hbm_to_vmem [thread:$0]  %s66, 256, %s68, [#allocation9], 128, 128, 8
    $region17: #{tpu_custom_call.1} parent=1 // pred_fallthru
      _
    // Predicated region
    $region18: #{tpu_custom_call.1} parent=1 // pred_check
      _
    $region19: #{tpu_custom_call.1} parent=1 // pred_check_branch
      %75 = sbr.rel (0) target = $region21
    $region20: #{tpu_custom_call.1} parent=1 // pred_region
      %77 = vsyncadd [#allocation9], 0
      %s78 = sshll.u32 %s4, 4
      %s79 = int_to_ptr.hbm [resolvable:$true] %s78
      %s80 = sshll.u32 [#allocation10], 4
      %s81 = int_to_ptr.vmem [resolvable:$true] %s80
      %86 = dma.hbm_to_vmem [thread:$0]  %s79, 1536, %s81, [#allocation9], 128, 128, 8
    $region21: #{tpu_custom_call.1} parent=1 // pred_fallthru
      _
    // Predicated region
    $region22: #{tpu_custom_call.1} parent=1 // pred_check
      _
    $region23: #{tpu_custom_call.1} parent=1 // pred_check_branch
      %88 = sbr.rel (0) target = $region25
    $region24: #{tpu_custom_call.1} parent=1 // pred_region
      _
    $region25: #{tpu_custom_call.1} parent=1 // pred_fallthru
      _
    // Predicated region
    $region26: #{tpu_custom_call.1} parent=1 // pred_check
      _
    $region27: #{tpu_custom_call.1} parent=1 // pred_check_branch
      %90 = sbr.rel (0) target = $region29
    $region28: #{tpu_custom_call.1} parent=1 // pred_region
      %92 = vsyncadd [#allocation12], 0
      %s93 = sshll.u32 %s6, 4
      %s94 = int_to_ptr.hbm [resolvable:$true] %s93
      %s95 = sshll.u32 [#allocation11], 4
      %s96 = int_to_ptr.vmem [resolvable:$true] %s95
      %101 = dma.hbm_to_vmem [thread:$0]  %s94, 512, %s96, [#allocation12], 128, 128, 8
    $region29: #{tpu_custom_call.1} parent=1 // pred_fallthru
      _
    // Predicated region
    $region30: #{tpu_custom_call.1} parent=1 // pred_check
      _
    $region31: #{tpu_custom_call.1} parent=1 // pred_check_branch
      %103 = sbr.rel (0) target = $region33
    $region32: #{tpu_custom_call.1} parent=1 // pred_region
      _
    $region33: #{tpu_custom_call.1} parent=1 // pred_fallthru
      _
    // Predicated region
    $region34: #{tpu_custom_call.1} parent=1 // pred_check
      _
    $region35: #{tpu_custom_call.1} parent=1 // pred_check_branch
      %105 = sbr.rel (0) target = $region37
    $region36: #{tpu_custom_call.1} parent=1 // pred_region
      %107 = dma.done [#allocation3], 256
    $region37: #{tpu_custom_call.1} parent=1 // pred_fallthru
      _
    // Predicated region
    $region38: #{tpu_custom_call.1} parent=1 // pred_check
      _
    $region39: #{tpu_custom_call.1} parent=1 // pred_check_branch
      %109 = sbr.rel (0) target = $region41
    $region40: #{tpu_custom_call.1} parent=1 // pred_region
      %111 = dma.done [#allocation6], 64
    $region41: #{tpu_custom_call.1} parent=1 // pred_fallthru
      _
    // Predicated region
    $region42: #{tpu_custom_call.1} parent=1 // pred_check
      _
    $region43: #{tpu_custom_call.1} parent=1 // pred_check_branch
      %113 = sbr.rel (0) target = $region45
    $region44: #{tpu_custom_call.1} parent=1 // pred_region
      %115 = dma.done [#allocation6], 64
    $region45: #{tpu_custom_call.1} parent=1 // pred_fallthru
      _
    // Predicated region
    $region46: #{tpu_custom_call.1} parent=1 // pred_check
      _
    $region47: #{tpu_custom_call.1} parent=1 // pred_check_branch
      %117 = sbr.rel (0) target = $region49
    $region48: #{tpu_custom_call.1} parent=1 // pred_region
      %119 = dma.done [#allocation9], 256
    $region49: #{tpu_custom_call.1} parent=1 // pred_fallthru
      _
    // Predicated region
    $region50: #{tpu_custom_call.1} parent=1 // pred_check
      _
    $region51: #{tpu_custom_call.1} parent=1 // pred_check_branch
      %121 = sbr.rel (0) target = $region53
    $region52: #{tpu_custom_call.1} parent=1 // pred_region
      %123 = dma.done [#allocation9], 1536
    $region53: #{tpu_custom_call.1} parent=1 // pred_fallthru
      _
    // Predicated region
    $region54: #{tpu_custom_call.1} parent=1 // pred_check
      _
    $region55: #{tpu_custom_call.1} parent=1 // pred_check_branch
      %125 = sbr.rel (0) target = $region57
    $region56: #{tpu_custom_call.1} parent=1 // pred_region
      %127 = dma.done [#allocation12], 512
    $region57: #{tpu_custom_call.1} parent=1 // pred_fallthru
      _
    %v129 = vld [vmem:[%s5] sm:$0x3]
    %v130 = vld [vmem:[#allocation2] sm:$0xff]
    %v131 = vld [vmem:[#allocation2 + $0x8] sm:$0xff]
    %v132 = vld [vmem:[#allocation8] sm:$0xff]
    %v133 = vld [vmem:[#allocation8 + $0x8] sm:$0xf]
    %v134 = vperm.slane %v129, 0
    %vm135 = vcmask 97280
    %v137 = vsel %vm135, %v130, 0
    %v140 = vsel %vm135, %v131, 0
    %vm142 = vcmask 1043456
    %v144 = vsel %vm142, %v133, 0
    %146 = vmatpush.msra.mxu0 0.0
    %147 = vmatpush.msra.mxu0 0.0
    %148 = vmatpush.msra.mxu0 0.0
    %149 = vmatpush.msra.mxu0 0.0
    %150 = vmatpush.msra.mxu0 0.0
    %151 = vmatpush.msra.mxu0 0.0
    %152 = vmatpush.msra.mxu0 0.0
    %153 = vmatpush.msra.mxu0 0.0
    %154 = vmatpush.msra.mxu0 0.0
    %155 = vmatpush.msra.mxu0 0.0
    %156 = vmatpush.msra.mxu0 0.0
    %157 = vmatpush.msra.mxu0 0.0
    %158 = vmatpush.msra.mxu0 0.0
    %159 = vmatpush.msra.mxu0 0.0
    %160 = vmatpush.msra.mxu0 %v144
    %161 = vmatpush.msra.mxu0 %v132
    %162 = vmatmul.f32.gmra.mxu0 %v137
    %v163 = vpop.f32.mrf.mxu0
    %v164 = vadd.f32 %v134, %v163
    %165 = vmatmul.f32.gmra.mxu0 %v140
    %v166 = vpop.f32.mrf.mxu0
    %v167 = vadd.f32 %v134, %v166
    %168 = vdwg.mxu0
    %v169 = vld [vmem:[#allocation10] sm:$0xff]
    %v170 = vld [vmem:[#allocation10 + $0x8] sm:$0xff]
    %v171 = vld [vmem:[#allocation10 + $0x10] sm:$0xff]
    %v172 = vld [vmem:[#allocation10 + $0x18] sm:$0xff]
    %v173 = vld [vmem:[#allocation10 + $0x20] sm:$0xff]
    %v174 = vld [vmem:[#allocation10 + $0x28] sm:$0xff]
    %v175 = vld [vmem:[#allocation10 + $0x30] sm:$0xff]
    %v176 = vld [vmem:[#allocation10 + $0x38] sm:$0xff]
    %v177 = vld [vmem:[#allocation10 + $0x40] sm:$0xff]
    %v178 = vld [vmem:[#allocation10 + $0x48] sm:$0xff]
    %v179 = vld [vmem:[#allocation10 + $0x50] sm:$0xff]
    %v180 = vld [vmem:[#allocation10 + $0x58] sm:$0xff]
    %v181 = vld [vmem:[#allocation5] sm:$0x3]
    %s182 = scalar_lea.vmem [#allocation5], 2
    %v183 = vld [vmem:[%s182] sm:$0x3]
    %v184 = vld [vmem:[#allocation7] sm:$0x3]
    %s185 = scalar_lea.vmem [#allocation7], 2
    %v186 = vld [vmem:[%s185] sm:$0x3]
    %188 = vrot.lane.b32.xlu0 %v183, 64
    %v189 = vpop.permute.xlu0 %188
    %vm191 = vcmask 261120
    %v192 = vsel %vm191, %v181, 0.0
    %vm193 = vcmask 523264
    %v194 = vsel %vm193, %v192, %v189
    %v195 = vpack.c.bf16 %v194, %v194
    %v208 = vunpack.c.l.b16 %v169
    %v209 = vunpack.c.l.b16 %v170
    %v210 = vunpack.c.l.b16 %v171
    %v211 = vunpack.c.l.b16 %v172
    %v212 = vunpack.c.l.b16 %v173
    %v213 = vunpack.c.l.b16 %v174
    %v214 = vunpack.c.l.b16 %v175
    %v215 = vunpack.c.l.b16 %v176
    %v216 = vunpack.c.l.b16 %v177
    %v217 = vunpack.c.l.b16 %v178
    %v218 = vunpack.c.l.b16 %v179
    %v219 = vunpack.c.l.b16 %v180
    %v220 = vpack.c.b16 %v209, %v208
    %v221 = vpack.c.b16 %v211, %v210
    %v222 = vpack.c.b16 %v213, %v212
    %v223 = vpack.c.b16 %v215, %v214
    %v224 = vpack.c.b16 %v217, %v216
    %v225 = vpack.c.b16 %v219, %v218
    %vm232 = vcmask 785408
    %v234 = vsel %vm232, %v195, 0
    %236 = vmatpush.bf16.msra.mxu0 0
    %237 = vmatpush.bf16.msra.mxu0 0
    %238 = vmatpush.bf16.msra.mxu0 %v225
    %239 = vmatpush.bf16.msra.mxu0 %v224
    %240 = vmatpush.bf16.msra.mxu0 %v223
    %241 = vmatpush.bf16.msra.mxu0 %v222
    %242 = vmatpush.bf16.msra.mxu0 %v221
    %243 = vmatpush.bf16.msra.mxu0 %v220
    %244 = vmatmul.bf16.gmra.mxu0 %v234
    %v245 = vpop.f32.mrf.mxu0
    %v246 = vadd.f32 0.0, %v245
    %v247 = vpop.f32.mrf.mxu0
    %248 = vdwg.mxu0
    %v249 = vadd.f32 %v246, %v164
    %v250 = vtanh.pop %v249
    %v251 = vmul.f32 %v250, 0.5
    %v252 = vadd.f32 %v251, 0.5
    %254 = vrot.lane.b32.xlu0 %v184, 32
    %v255 = vpop.permute.xlu0 %254
    %v257 = vmul.f32 %v252, %v255
    %259 = vrot.lane.b32.xlu0 %v250, 32
    %v260 = vpop.permute.xlu0 %259
    %v262 = vmul.f32 %v252, %v260
    %264 = vrot.lane.b32.xlu0 %v262, 32
    %v265 = vpop.permute.xlu0 %264
    %v267 = vadd.f32 %v257, %v265
    %v268 = vtanh.pop %v267
    %270 = vrot.lane.b32.xlu0 %v268, 32
    %v271 = vpop.permute.xlu0 %270
    %v273 = vmul.f32 %v252, %v271
    %275 = vrot.lane.b32.xlu0 %v273, 64
    %v276 = vpop.permute.xlu0 %275
    %278 = vrot.lane.b32.xlu0 %v273, 96
    %v279 = vpop.permute.xlu0 %278
    %v281 = vsel %vm191, %v276, %v279
    %v282 = vsel %vm193, %v281, %v189
    %v283 = vpack.c.bf16 %v282, %v282
    %v284 = vunpack.c.h.b16 %v169
    %v285 = vunpack.c.h.b16 %v170
    %v286 = vunpack.c.h.b16 %v171
    %v287 = vunpack.c.h.b16 %v172
    %v288 = vunpack.c.h.b16 %v173
    %v289 = vunpack.c.h.b16 %v174
    %v290 = vunpack.c.h.b16 %v175
    %v291 = vunpack.c.h.b16 %v176
    %v292 = vunpack.c.h.b16 %v177
    %v293 = vunpack.c.h.b16 %v178
    %v294 = vunpack.c.h.b16 %v179
    %v295 = vunpack.c.h.b16 %v180
    %v296 = vpack.c.b16 %v285, %v284
    %v297 = vpack.c.b16 %v287, %v286
    %v298 = vpack.c.b16 %v289, %v288
    %v299 = vpack.c.b16 %v291, %v290
    %v300 = vpack.c.b16 %v293, %v292
    %v301 = vpack.c.b16 %v295, %v294
    %v309 = vsel %vm232, %v283, 0
    %311 = vmatpush.bf16.msra.mxu0 0
    %312 = vmatpush.bf16.msra.mxu0 0
    %313 = vmatpush.bf16.msra.mxu0 %v225
    %314 = vmatpush.bf16.msra.mxu0 %v224
    %315 = vmatpush.bf16.msra.mxu0 %v223
    %316 = vmatpush.bf16.msra.mxu0 %v222
    %317 = vmatpush.bf16.msra.mxu0 %v221
    %318 = vmatpush.bf16.msra.mxu0 %v220
    %319 = vmatmul.bf16.gmra.mxu0 %v309
    %v320 = vpop.f32.mrf.mxu0
    %v321 = vadd.f32 0.0, %v320
    %v322 = vpop.f32.mrf.mxu0
    %323 = vdwg.mxu0
    %324 = vmatpush.bf16.msra.mxu0 0
    %325 = vmatpush.bf16.msra.mxu0 0
    %326 = vmatpush.bf16.msra.mxu0 %v301
    %327 = vmatpush.bf16.msra.mxu0 %v300
    %328 = vmatpush.bf16.msra.mxu0 %v299
    %329 = vmatpush.bf16.msra.mxu0 %v298
    %330 = vmatpush.bf16.msra.mxu0 %v297
    %331 = vmatpush.bf16.msra.mxu0 %v296
    %332 = vmatmul.bf16.gmra.mxu0 %v309
    %v333 = vpop.f32.mrf.mxu0
    %v334 = vadd.f32 0.0, %v333
    %v335 = vpop.f32.mrf.mxu0
    %336 = vdwg.mxu0
    %v338 = vrot.slane %v164, 2
    %v340 = vadd.f32 %v321, %v338
    %v341 = vtanh.pop %v340
    %v342 = vmul.f32 %v341, 0.5
    %v343 = vadd.f32 %v342, 0.5
    %v344 = vmul.f32 %v343, %v267
    %346 = vrot.lane.b32.xlu0 %v341, 32
    %v347 = vpop.permute.xlu0 %346
    %v349 = vmul.f32 %v343, %v347
    %351 = vrot.lane.b32.xlu0 %v349, 32
    %v352 = vpop.permute.xlu0 %351
    %v354 = vadd.f32 %v344, %v352
    %v355 = vtanh.pop %v354
    %357 = vrot.lane.b32.xlu0 %v355, 32
    %v358 = vpop.permute.xlu0 %357
    %v360 = vmul.f32 %v343, %v358
    %v361 = vperm.slane %v129, 1
    %v362 = vadd.f32 %v334, %v361
    %v363 = vtanh.pop %v362
    %v364 = vmul.f32 %v363, 0.5
    %v365 = vadd.f32 %v364, 0.5
    %367 = vrot.lane.b32.xlu0 %v186, 32
    %v368 = vpop.permute.xlu0 %367
    %v370 = vmul.f32 %v365, %v368
    %372 = vrot.lane.b32.xlu0 %v363, 32
    %v373 = vpop.permute.xlu0 %372
    %v375 = vmul.f32 %v365, %v373
    %377 = vrot.lane.b32.xlu0 %v375, 32
    %v378 = vpop.permute.xlu0 %377
    %v380 = vadd.f32 %v370, %v378
    %v381 = vtanh.pop %v380
    %383 = vrot.lane.b32.xlu0 %v381, 32
    %v384 = vpop.permute.xlu0 %383
    %v386 = vmul.f32 %v365, %v384
    %388 = vrot.lane.b32.xlu0 %v360, 64
    %v389 = vpop.permute.xlu0 %388
    %391 = vrot.lane.b32.xlu0 %v360, 96
    %v392 = vpop.permute.xlu0 %391
    %v394 = vsel %vm191, %v389, %v392
    %v395 = vsel %vm193, %v394, %v386
    %v396 = vpack.c.bf16 %v395, %v395
    %v398 = vsel %vm232, %v396, 0
    %400 = vmatpush.bf16.msra.mxu0 0
    %401 = vmatpush.bf16.msra.mxu0 0
    %402 = vmatpush.bf16.msra.mxu0 %v225
    %403 = vmatpush.bf16.msra.mxu0 %v224
    %404 = vmatpush.bf16.msra.mxu0 %v223
    %405 = vmatpush.bf16.msra.mxu0 %v222
    %406 = vmatpush.bf16.msra.mxu0 %v221
    %407 = vmatpush.bf16.msra.mxu0 %v220
    %408 = vmatmul.bf16.gmra.mxu0 %v398
    %v409 = vpop.f32.mrf.mxu0
    %v410 = vadd.f32 0.0, %v409
    %v411 = vpop.f32.mrf.mxu0
    %412 = vdwg.mxu0
    %413 = vmatpush.bf16.msra.mxu0 0
    %414 = vmatpush.bf16.msra.mxu0 0
    %415 = vmatpush.bf16.msra.mxu0 %v301
    %416 = vmatpush.bf16.msra.mxu0 %v300
    %417 = vmatpush.bf16.msra.mxu0 %v299
    %418 = vmatpush.bf16.msra.mxu0 %v298
    %419 = vmatpush.bf16.msra.mxu0 %v297
    %420 = vmatpush.bf16.msra.mxu0 %v296
    %421 = vmatmul.bf16.gmra.mxu0 %v398
    %v422 = vpop.f32.mrf.mxu0
    %v423 = vadd.f32 0.0, %v422
    %v424 = vpop.f32.mrf.mxu0
    %425 = vdwg.mxu0
    %v426 = vrot.slane %v164, 4
    %v428 = vadd.f32 %v410, %v426
    %v429 = vtanh.pop %v428
    %v430 = vmul.f32 %v429, 0.5
    %v431 = vadd.f32 %v430, 0.5
    %v432 = vmul.f32 %v431, %v354
    %434 = vrot.lane.b32.xlu0 %v429, 32
    %v435 = vpop.permute.xlu0 %434
    %v437 = vmul.f32 %v431, %v435
    %439 = vrot.lane.b32.xlu0 %v437, 32
    %v440 = vpop.permute.xlu0 %439
    %v442 = vadd.f32 %v432, %v440
    %v443 = vtanh.pop %v442
    %445 = vrot.lane.b32.xlu0 %v443, 32
    %v446 = vpop.permute.xlu0 %445
    %v448 = vmul.f32 %v431, %v446
    %v449 = vadd.f32 %v423, %v361
    %v450 = vtanh.pop %v449
    %v451 = vmul.f32 %v450, 0.5
    %v452 = vadd.f32 %v451, 0.5
    %v453 = vmul.f32 %v452, %v380
    %455 = vrot.lane.b32.xlu0 %v450, 32
    %v456 = vpop.permute.xlu0 %455
    %v458 = vmul.f32 %v452, %v456
    %460 = vrot.lane.b32.xlu0 %v458, 32
    %v461 = vpop.permute.xlu0 %460
    %v463 = vadd.f32 %v453, %v461
    %v464 = vtanh.pop %v463
    %466 = vrot.lane.b32.xlu0 %v464, 32
    %v467 = vpop.permute.xlu0 %466
    %v469 = vmul.f32 %v452, %v467
    %471 = vrot.lane.b32.xlu0 %v448, 64
    %v472 = vpop.permute.xlu0 %471
    %474 = vrot.lane.b32.xlu0 %v448, 96
    %v475 = vpop.permute.xlu0 %474
    %v477 = vsel %vm191, %v472, %v475
    %v478 = vsel %vm193, %v477, %v469
    %v479 = vpack.c.bf16 %v478, %v478
    %v481 = vsel %vm232, %v479, 0
    %483 = vmatpush.bf16.msra.mxu0 0
    %484 = vmatpush.bf16.msra.mxu0 0
    %485 = vmatpush.bf16.msra.mxu0 %v225
    %486 = vmatpush.bf16.msra.mxu0 %v224
    %487 = vmatpush.bf16.msra.mxu0 %v223
    %488 = vmatpush.bf16.msra.mxu0 %v222
    %489 = vmatpush.bf16.msra.mxu0 %v221
    %490 = vmatpush.bf16.msra.mxu0 %v220
    %491 = vmatmul.bf16.gmra.mxu0 %v481
    %v492 = vpop.f32.mrf.mxu0
    %v493 = vadd.f32 0.0, %v492
    %v494 = vpop.f32.mrf.mxu0
    %495 = vdwg.mxu0
    %496 = vmatpush.bf16.msra.mxu0 0
    %497 = vmatpush.bf16.msra.mxu0 0
    %498 = vmatpush.bf16.msra.mxu0 %v301
    %499 = vmatpush.bf16.msra.mxu0 %v300
    %500 = vmatpush.bf16.msra.mxu0 %v299
    %501 = vmatpush.bf16.msra.mxu0 %v298
    %502 = vmatpush.bf16.msra.mxu0 %v297
    %503 = vmatpush.bf16.msra.mxu0 %v296
    %504 = vmatmul.bf16.gmra.mxu0 %v481
    %v505 = vpop.f32.mrf.mxu0
    %v506 = vadd.f32 0.0, %v505
    %v507 = vpop.f32.mrf.mxu0
    %508 = vdwg.mxu0
    %v509 = vrot.slane %v164, 6
    %v511 = vadd.f32 %v493, %v509
    %v512 = vtanh.pop %v511
    %v513 = vmul.f32 %v512, 0.5
    %v514 = vadd.f32 %v513, 0.5
    %v515 = vmul.f32 %v514, %v442
    %517 = vrot.lane.b32.xlu0 %v512, 32
    %v518 = vpop.permute.xlu0 %517
    %v520 = vmul.f32 %v514, %v518
    %522 = vrot.lane.b32.xlu0 %v520, 32
    %v523 = vpop.permute.xlu0 %522
    %v525 = vadd.f32 %v515, %v523
    %v526 = vtanh.pop %v525
    %528 = vrot.lane.b32.xlu0 %v526, 32
    %v529 = vpop.permute.xlu0 %528
    %v531 = vmul.f32 %v514, %v529
    %v532 = vadd.f32 %v506, %v361
    %v533 = vtanh.pop %v532
    %v534 = vmul.f32 %v533, 0.5
    %v535 = vadd.f32 %v534, 0.5
    %v536 = vmul.f32 %v535, %v463
    %538 = vrot.lane.b32.xlu0 %v533, 32
    %v539 = vpop.permute.xlu0 %538
    %v541 = vmul.f32 %v535, %v539
    %543 = vrot.lane.b32.xlu0 %v541, 32
    %v544 = vpop.permute.xlu0 %543
    %v546 = vadd.f32 %v536, %v544
    %v547 = vtanh.pop %v546
    %549 = vrot.lane.b32.xlu0 %v547, 32
    %v550 = vpop.permute.xlu0 %549
    %v552 = vmul.f32 %v535, %v550
    %554 = vrot.lane.b32.xlu0 %v531, 64
    %v555 = vpop.permute.xlu0 %554
    %557 = vrot.lane.b32.xlu0 %v531, 96
    %v558 = vpop.permute.xlu0 %557
    %v560 = vsel %vm191, %v555, %v558
    %v561 = vsel %vm193, %v560, %v552
    %v562 = vpack.c.bf16 %v561, %v561
    %v564 = vsel %vm232, %v562, 0
    %566 = vmatpush.bf16.msra.mxu0 0
    %567 = vmatpush.bf16.msra.mxu0 0
    %568 = vmatpush.bf16.msra.mxu0 %v225
    %569 = vmatpush.bf16.msra.mxu0 %v224
    %570 = vmatpush.bf16.msra.mxu0 %v223
    %571 = vmatpush.bf16.msra.mxu0 %v222
    %572 = vmatpush.bf16.msra.mxu0 %v221
    %573 = vmatpush.bf16.msra.mxu0 %v220
    %574 = vmatmul.bf16.gmra.mxu0 %v564
    %v575 = vpop.f32.mrf.mxu0
    %v576 = vadd.f32 0.0, %v575
    %v577 = vpop.f32.mrf.mxu0
    %578 = vdwg.mxu0
    %579 = vmatpush.bf16.msra.mxu0 0
    %580 = vmatpush.bf16.msra.mxu0 0
    %581 = vmatpush.bf16.msra.mxu0 %v301
    %582 = vmatpush.bf16.msra.mxu0 %v300
    %583 = vmatpush.bf16.msra.mxu0 %v299
    %584 = vmatpush.bf16.msra.mxu0 %v298
    %585 = vmatpush.bf16.msra.mxu0 %v297
    %586 = vmatpush.bf16.msra.mxu0 %v296
    %587 = vmatmul.bf16.gmra.mxu0 %v564
    %v588 = vpop.f32.mrf.mxu0
    %v589 = vadd.f32 0.0, %v588
    %v590 = vpop.f32.mrf.mxu0
    %591 = vdwg.mxu0
    %v592 = vadd.f32 %v576, %v167
    %v593 = vtanh.pop %v592
    %v594 = vmul.f32 %v593, 0.5
    %v595 = vadd.f32 %v594, 0.5
    %v596 = vmul.f32 %v595, %v525
    %598 = vrot.lane.b32.xlu0 %v593, 32
    %v599 = vpop.permute.xlu0 %598
    %v601 = vmul.f32 %v595, %v599
    %603 = vrot.lane.b32.xlu0 %v601, 32
    %v604 = vpop.permute.xlu0 %603
    %v606 = vadd.f32 %v596, %v604
    %v607 = vtanh.pop %v606
    %609 = vrot.lane.b32.xlu0 %v607, 32
    %v610 = vpop.permute.xlu0 %609
    %v612 = vmul.f32 %v595, %v610
    %v613 = vadd.f32 %v589, %v361
    %v614 = vtanh.pop %v613
    %v615 = vmul.f32 %v614, 0.5
    %v616 = vadd.f32 %v615, 0.5
    %v617 = vmul.f32 %v616, %v546
    %619 = vrot.lane.b32.xlu0 %v614, 32
    %v620 = vpop.permute.xlu0 %619
    %v622 = vmul.f32 %v616, %v620
    %624 = vrot.lane.b32.xlu0 %v622, 32
    %v625 = vpop.permute.xlu0 %624
    %v627 = vadd.f32 %v617, %v625
    %v628 = vtanh.pop %v627
    %630 = vrot.lane.b32.xlu0 %v628, 32
    %v631 = vpop.permute.xlu0 %630
    %v633 = vmul.f32 %v616, %v631
    %635 = vrot.lane.b32.xlu0 %v612, 64
    %v636 = vpop.permute.xlu0 %635
    %638 = vrot.lane.b32.xlu0 %v612, 96
    %v639 = vpop.permute.xlu0 %638
    %v641 = vsel %vm191, %v636, %v639
    %v642 = vsel %vm193, %v641, %v633
    %v643 = vpack.c.bf16 %v642, %v642
    %v645 = vsel %vm232, %v643, 0
    %647 = vmatpush.bf16.msra.mxu0 0
    %648 = vmatpush.bf16.msra.mxu0 0
    %649 = vmatpush.bf16.msra.mxu0 %v225
    %650 = vmatpush.bf16.msra.mxu0 %v224
    %651 = vmatpush.bf16.msra.mxu0 %v223
    %652 = vmatpush.bf16.msra.mxu0 %v222
    %653 = vmatpush.bf16.msra.mxu0 %v221
    %654 = vmatpush.bf16.msra.mxu0 %v220
    %655 = vmatmul.bf16.gmra.mxu0 %v645
    %v656 = vpop.f32.mrf.mxu0
    %v657 = vadd.f32 0.0, %v656
    %v658 = vpop.f32.mrf.mxu0
    %659 = vdwg.mxu0
    %660 = vmatpush.bf16.msra.mxu0 0
    %661 = vmatpush.bf16.msra.mxu0 0
    %662 = vmatpush.bf16.msra.mxu0 %v301
    %663 = vmatpush.bf16.msra.mxu0 %v300
    %664 = vmatpush.bf16.msra.mxu0 %v299
    %665 = vmatpush.bf16.msra.mxu0 %v298
    %666 = vmatpush.bf16.msra.mxu0 %v297
    %667 = vmatpush.bf16.msra.mxu0 %v296
    %668 = vmatmul.bf16.gmra.mxu0 %v645
    %v669 = vpop.f32.mrf.mxu0
    %v670 = vadd.f32 0.0, %v669
    %v671 = vpop.f32.mrf.mxu0
    %672 = vdwg.mxu0
    %v674 = vrot.slane %v167, 2
    %v676 = vadd.f32 %v657, %v674
    %v677 = vtanh.pop %v676
    %v678 = vmul.f32 %v677, 0.5
    %v679 = vadd.f32 %v678, 0.5
    %v680 = vmul.f32 %v679, %v606
    %682 = vrot.lane.b32.xlu0 %v677, 32
    %v683 = vpop.permute.xlu0 %682
    %v685 = vmul.f32 %v679, %v683
    %687 = vrot.lane.b32.xlu0 %v685, 32
    %v688 = vpop.permute.xlu0 %687
    %v690 = vadd.f32 %v680, %v688
    %v691 = vtanh.pop %v690
    %693 = vrot.lane.b32.xlu0 %v691, 32
    %v694 = vpop.permute.xlu0 %693
    %v696 = vmul.f32 %v679, %v694
    %v697 = vadd.f32 %v670, %v361
    %v698 = vtanh.pop %v697
    %v699 = vmul.f32 %v698, 0.5
    %v700 = vadd.f32 %v699, 0.5
    %v701 = vmul.f32 %v700, %v627
    %703 = vrot.lane.b32.xlu0 %v698, 32
    %v704 = vpop.permute.xlu0 %703
    %v706 = vmul.f32 %v700, %v704
    %708 = vrot.lane.b32.xlu0 %v706, 32
    %v709 = vpop.permute.xlu0 %708
    %v711 = vadd.f32 %v701, %v709
    %v712 = vtanh.pop %v711
    %714 = vrot.lane.b32.xlu0 %v712, 32
    %v715 = vpop.permute.xlu0 %714
    %v717 = vmul.f32 %v700, %v715
    %719 = vrot.lane.b32.xlu0 %v696, 64
    %v720 = vpop.permute.xlu0 %719
    %722 = vrot.lane.b32.xlu0 %v696, 96
    %v723 = vpop.permute.xlu0 %722
    %v725 = vsel %vm191, %v720, %v723
    %v726 = vsel %vm193, %v725, %v717
    %v727 = vpack.c.bf16 %v726, %v726
    %v729 = vsel %vm232, %v727, 0
    %731 = vmatpush.bf16.msra.mxu0 0
    %732 = vmatpush.bf16.msra.mxu0 0
    %733 = vmatpush.bf16.msra.mxu0 %v225
    %734 = vmatpush.bf16.msra.mxu0 %v224
    %735 = vmatpush.bf16.msra.mxu0 %v223
    %736 = vmatpush.bf16.msra.mxu0 %v222
    %737 = vmatpush.bf16.msra.mxu0 %v221
    %738 = vmatpush.bf16.msra.mxu0 %v220
    %739 = vmatmul.bf16.gmra.mxu0 %v729
    %v740 = vpop.f32.mrf.mxu0
    %v741 = vadd.f32 0.0, %v740
    %v742 = vpop.f32.mrf.mxu0
    %743 = vdwg.mxu0
    %744 = vmatpush.bf16.msra.mxu0 0
    %745 = vmatpush.bf16.msra.mxu0 0
    %746 = vmatpush.bf16.msra.mxu0 %v301
    %747 = vmatpush.bf16.msra.mxu0 %v300
    %748 = vmatpush.bf16.msra.mxu0 %v299
    %749 = vmatpush.bf16.msra.mxu0 %v298
    %750 = vmatpush.bf16.msra.mxu0 %v297
    %751 = vmatpush.bf16.msra.mxu0 %v296
    %752 = vmatmul.bf16.gmra.mxu0 %v729
    %v753 = vpop.f32.mrf.mxu0
    %v754 = vadd.f32 0.0, %v753
    %v755 = vpop.f32.mrf.mxu0
    %756 = vdwg.mxu0
    %v757 = vrot.slane %v167, 4
    %v759 = vadd.f32 %v741, %v757
    %v760 = vtanh.pop %v759
    %v761 = vmul.f32 %v760, 0.5
    %v762 = vadd.f32 %v761, 0.5
    %v763 = vmul.f32 %v762, %v690
    %765 = vrot.lane.b32.xlu0 %v760, 32
    %v766 = vpop.permute.xlu0 %765
    %v768 = vmul.f32 %v762, %v766
    %770 = vrot.lane.b32.xlu0 %v768, 32
    %v771 = vpop.permute.xlu0 %770
    %v773 = vadd.f32 %v763, %v771
    %v774 = vtanh.pop %v773
    %776 = vrot.lane.b32.xlu0 %v774, 32
    %v777 = vpop.permute.xlu0 %776
    %v779 = vmul.f32 %v762, %v777
    %v780 = vadd.f32 %v754, %v361
    %v781 = vtanh.pop %v780
    %v782 = vmul.f32 %v781, 0.5
    %v783 = vadd.f32 %v782, 0.5
    %v784 = vmul.f32 %v783, %v711
    %786 = vrot.lane.b32.xlu0 %v781, 32
    %v787 = vpop.permute.xlu0 %786
    %v789 = vmul.f32 %v783, %v787
    %791 = vrot.lane.b32.xlu0 %v789, 32
    %v792 = vpop.permute.xlu0 %791
    %v794 = vadd.f32 %v784, %v792
    %v795 = vtanh.pop %v794
    %797 = vrot.lane.b32.xlu0 %v795, 32
    %v798 = vpop.permute.xlu0 %797
    %v800 = vmul.f32 %v783, %v798
    %802 = vrot.lane.b32.xlu0 %v779, 64
    %v803 = vpop.permute.xlu0 %802
    %805 = vrot.lane.b32.xlu0 %v779, 96
    %v806 = vpop.permute.xlu0 %805
    %v808 = vsel %vm191, %v803, %v806
    %v809 = vsel %vm193, %v808, %v800
    %v810 = vpack.c.bf16 %v809, %v809
    %v812 = vsel %vm232, %v810, 0
    %814 = vmatpush.bf16.msra.mxu0 0
    %815 = vmatpush.bf16.msra.mxu0 0
    %816 = vmatpush.bf16.msra.mxu0 %v225
    %817 = vmatpush.bf16.msra.mxu0 %v224
    %818 = vmatpush.bf16.msra.mxu0 %v223
    %819 = vmatpush.bf16.msra.mxu0 %v222
    %820 = vmatpush.bf16.msra.mxu0 %v221
    %821 = vmatpush.bf16.msra.mxu0 %v220
    %822 = vmatmul.bf16.gmra.mxu0 %v812
    %v823 = vpop.f32.mrf.mxu0
    %v824 = vadd.f32 0.0, %v823
    %v825 = vpop.f32.mrf.mxu0
    %826 = vdwg.mxu0
    %827 = vmatpush.bf16.msra.mxu0 0
    %828 = vmatpush.bf16.msra.mxu0 0
    %829 = vmatpush.bf16.msra.mxu0 %v301
    %830 = vmatpush.bf16.msra.mxu0 %v300
    %831 = vmatpush.bf16.msra.mxu0 %v299
    %832 = vmatpush.bf16.msra.mxu0 %v298
    %833 = vmatpush.bf16.msra.mxu0 %v297
    %834 = vmatpush.bf16.msra.mxu0 %v296
    %835 = vmatmul.bf16.gmra.mxu0 %v812
    %v836 = vpop.f32.mrf.mxu0
    %v837 = vadd.f32 0.0, %v836
    %v838 = vpop.f32.mrf.mxu0
    %839 = vdwg.mxu0
    %v840 = vrot.slane %v167, 6
    %v842 = vadd.f32 %v824, %v840
    %v843 = vtanh.pop %v842
    %v844 = vmul.f32 %v843, 0.5
    %v845 = vadd.f32 %v844, 0.5
    %v846 = vmul.f32 %v845, %v773
    %848 = vrot.lane.b32.xlu0 %v843, 32
    %v849 = vpop.permute.xlu0 %848
    %v851 = vmul.f32 %v845, %v849
    %853 = vrot.lane.b32.xlu0 %v851, 32
    %v854 = vpop.permute.xlu0 %853
    %v856 = vadd.f32 %v846, %v854
    %v857 = vtanh.pop %v856
    %859 = vrot.lane.b32.xlu0 %v857, 32
    %v860 = vpop.permute.xlu0 %859
    %v862 = vmul.f32 %v845, %v860
    %v863 = vadd.f32 %v837, %v361
    %v864 = vtanh.pop %v863
    %v865 = vmul.f32 %v864, 0.5
    %v866 = vadd.f32 %v865, 0.5
    %v867 = vmul.f32 %v866, %v794
    %869 = vrot.lane.b32.xlu0 %v864, 32
    %v870 = vpop.permute.xlu0 %869
    %v872 = vmul.f32 %v866, %v870
    %874 = vrot.lane.b32.xlu0 %v872, 32
    %v875 = vpop.permute.xlu0 %874
    %v877 = vadd.f32 %v867, %v875
    %v878 = vtanh.pop %v877
    %880 = vrot.lane.b32.xlu0 %v878, 32
    %v881 = vpop.permute.xlu0 %880
    %v883 = vmul.f32 %v866, %v881
    %885 = vrot.lane.b32.xlu0 %v862, 64
    %v886 = vpop.permute.xlu0 %885
    %888 = vrot.lane.b32.xlu0 %v862, 96
    %v889 = vpop.permute.xlu0 %888
    %v891 = vsel %vm191, %v886, %v889
    %v892 = vsel %vm193, %v891, %v883
    %v893 = vpack.c.bf16 %v892, %v892
    %v895 = vsel %vm232, %v893, 0
    %897 = vmatpush.bf16.msra.mxu0 0
    %898 = vmatpush.bf16.msra.mxu0 0
    %899 = vmatpush.bf16.msra.mxu0 %v301
    %900 = vmatpush.bf16.msra.mxu0 %v300
    %901 = vmatpush.bf16.msra.mxu0 %v299
    %902 = vmatpush.bf16.msra.mxu0 %v298
    %903 = vmatpush.bf16.msra.mxu0 %v297
    %904 = vmatpush.bf16.msra.mxu0 %v296
    %905 = vmatmul.bf16.gmra.mxu0 %v895
    %v906 = vpop.f32.mrf.mxu0
    %v907 = vadd.f32 0.0, %v906
    %v908 = vpop.f32.mrf.mxu0
    %909 = vdwg.mxu0
    %v910 = vadd.f32 %v907, %v361
    %v911 = vtanh.pop %v910
    %v912 = vmul.f32 %v911, 0.5
    %v913 = vadd.f32 %v912, 0.5
    %v914 = vmul.f32 %v913, %v877
    %916 = vrot.lane.b32.xlu0 %v911, 32
    %v917 = vpop.permute.xlu0 %916
    %v919 = vmul.f32 %v913, %v917
    %921 = vrot.lane.b32.xlu0 %v919, 32
    %v922 = vpop.permute.xlu0 %921
    %v924 = vadd.f32 %v914, %v922
    %v925 = vtanh.pop %v924
    %927 = vrot.lane.b32.xlu0 %v925, 32
    %v928 = vpop.permute.xlu0 %927
    %v930 = vmul.f32 %v913, %v928
    %932 = vrot.lane.b32.xlu0 %v930, 64
    %v933 = vpop.permute.xlu0 %932
    %vm935 = vcmask 254976
    %936 = vst.msk [vmem:[#allocation14] sm:$0x3] %vm935, %v886
    %937 = vst.msk [vmem:[#allocation14 + $0x2] sm:$0x3] %vm935, %v933
    %940 = vrot.lane.b32.xlu0 %v856, 96
    %v941 = vpop.permute.xlu0 %940
    %942 = vrot.lane.b32.xlu0 %v924, 96
    %v943 = vpop.permute.xlu0 %942
    %946 = vst.msk [vmem:[#allocation16] sm:$0x3] %vm935, %v941
    %947 = vst.msk [vmem:[#allocation16 + $0x2] sm:$0x3] %vm935, %v943
    %v949 = vrot.slane %v469, 6
    %v952 = vrot.slane %v552, 4
    %v955 = vrot.slane %v633, 2
    %v958 = vrot.slane %v800, 6
    %v961 = vrot.slane %v883, 4
    %v963 = vrot.slane %v930, 2
    %vm965 = vcmask 1041408
    %v966 = vsel %vm965, %v386, %v949
    %v967 = vsel %vm142, %v966, %v952
    %vm968 = vcmask 1045504
    %v969 = vsel %vm968, %v967, %v955
    %v970 = vsel %vm965, %v717, %v958
    %v971 = vsel %vm142, %v970, %v961
    %v972 = vsel %vm968, %v971, %v963
    %v973 = vmax.f32 %v969, 0.0
    %v974 = vmax.f32 %v972, 0.0
    %v975 = vld [vmem:[#allocation11] sm:$0xff]
    %v976 = vld [vmem:[#allocation11 + $0x8] sm:$0xff]
    %v977 = vld [vmem:[#allocation11 + $0x10] sm:$0xff]
    %v978 = vld [vmem:[#allocation11 + $0x18] sm:$0xff]
    %v979 = vld [vmem:[%s7] sm:$0x1]
    %v981 = vperm.slane %v979, 0
    %985 = vrot.lane.b32.xlu0 %v973, 64
    %v986 = vpop.permute.xlu0 %985
    %987 = vrot.lane.b32.xlu0 %v974, 64
    %v988 = vpop.permute.xlu0 %987
    %v989 = vsel %vm191, %v986, 0
    %v991 = vsel %vm191, %v988, 0
    %993 = vmatpush.msra.mxu0 0.0
    %994 = vmatpush.msra.mxu0 0.0
    %995 = vmatpush.msra.mxu0 0.0
    %996 = vmatpush.msra.mxu0 0.0
    %997 = vmatpush.msra.mxu0 0.0
    %998 = vmatpush.msra.mxu0 0.0
    %999 = vmatpush.msra.mxu0 0.0
    %1000 = vmatpush.msra.mxu0 0.0
    %1001 = vmatpush.msra.mxu0 0.0
    %1002 = vmatpush.msra.mxu0 0.0
    %1003 = vmatpush.msra.mxu0 0.0
    %1004 = vmatpush.msra.mxu0 0.0
    %1005 = vmatpush.msra.mxu0 %v978
    %1006 = vmatpush.msra.mxu0 %v977
    %1007 = vmatpush.msra.mxu0 %v976
    %1008 = vmatpush.msra.mxu0 %v975
    %1009 = vmatmul.f32.gmra.mxu0 %v989
    %v1010 = vpop.f32.mrf.mxu0
    %v1011 = vadd.f32 %v981, %v1010
    %1012 = vmatmul.f32.gmra.mxu0 %v991
    %v1013 = vpop.f32.mrf.mxu0
    %v1014 = vadd.f32 %v981, %v1013
    %1015 = vdwg.mxu0
    %1016 = vst [vmem:[#allocation13] sm:$0xff] %v1011
    %1017 = vst [vmem:[#allocation13 + $0x8] sm:$0xff] %v1014
    // Predicated region
    $region58: #{tpu_custom_call.1} parent=1 // pred_check
      _
    $region59: #{tpu_custom_call.1} parent=1 // pred_check_branch
      %1019 = sbr.rel (0) target = $region61
    $region60: #{tpu_custom_call.1} parent=1 // pred_region
      %1021 = vsyncadd [#allocation4], 0
      %s1022 = sshll.u32 [#allocation13], 4
      %s1023 = int_to_ptr.vmem [resolvable:$true] %s1022
      %s1024 = sshll.u32 %s8, 4
      %s1025 = int_to_ptr.hbm [resolvable:$true] %s1024
      %1030 = dma.vmem_to_hbm [thread:$0]  %s1023, 256, %s1025, [#allocation4], 128, 128, 8
    $region61: #{tpu_custom_call.1} parent=1 // pred_fallthru
      _
    // Predicated region
    $region62: #{tpu_custom_call.1} parent=1 // pred_check
      _
    $region63: #{tpu_custom_call.1} parent=1 // pred_check_branch
      %1032 = sbr.rel (0) target = $region65
    $region64: #{tpu_custom_call.1} parent=1 // pred_region
      %1034 = vsyncadd [#allocation15], 0
      %s1035 = sshll.u32 [#allocation14], 4
      %s1036 = int_to_ptr.vmem [resolvable:$true] %s1035
      %s1037 = sshll.u32 %s9, 4
      %s1038 = int_to_ptr.hbm [resolvable:$true] %s1037
      %1043 = dma.vmem_to_hbm [thread:$0]  %s1036, 64, %s1038, [#allocation15], 32, 32, 2
    $region65: #{tpu_custom_call.1} parent=1 // pred_fallthru
      _
    // Predicated region
    $region66: #{tpu_custom_call.1} parent=1 // pred_check
      _
    $region67: #{tpu_custom_call.1} parent=1 // pred_check_branch
      %1045 = sbr.rel (0) target = $region69
    $region68: #{tpu_custom_call.1} parent=1 // pred_region
      %1047 = vsyncadd [#allocation15], 0
      %s1048 = sshll.u32 [#allocation16], 4
      %s1049 = int_to_ptr.vmem [resolvable:$true] %s1048
      %s1050 = sshll.u32 %s10, 4
      %s1051 = int_to_ptr.hbm [resolvable:$true] %s1050
      %1056 = dma.vmem_to_hbm [thread:$0]  %s1049, 64, %s1051, [#allocation15], 32, 32, 2
    $region69: #{tpu_custom_call.1} parent=1 // pred_fallthru
      _
    // Predicated region
    $region70: #{tpu_custom_call.1} parent=1 // pred_check
      _
    $region71: #{tpu_custom_call.1} parent=1 // pred_check_branch
      %1058 = sbr.rel (0) target = $region73
    $region72: #{tpu_custom_call.1} parent=1 // pred_region
      %1060 = dma.done [#allocation4], 256
    $region73: #{tpu_custom_call.1} parent=1 // pred_fallthru
      _
    // Predicated region
    $region74: #{tpu_custom_call.1} parent=1 // pred_check
      _
    $region75: #{tpu_custom_call.1} parent=1 // pred_check_branch
      %1062 = sbr.rel (0) target = $region77
    $region76: #{tpu_custom_call.1} parent=1 // pred_region
      %1064 = dma.done [#allocation15], 64
    $region77: #{tpu_custom_call.1} parent=1 // pred_fallthru
      _
    // Predicated region
    $region78: #{tpu_custom_call.1} parent=1 // pred_check
      _
    $region79: #{tpu_custom_call.1} parent=1 // pred_check_branch
      %1066 = sbr.rel (0) target = $region81
    $region80: #{tpu_custom_call.1} parent=1 // pred_region
      %1068 = dma.done [#allocation15], 64
    $region81: #{tpu_custom_call.1} parent=1 // pred_fallthru
      _
    %1069 = vsyncpa [#allocation3], 1
    %1070 = vsyncpa [#allocation6], 1
    %1071 = vsyncpa [#allocation9], 1
    %1072 = vsyncpa [#allocation12], 1
    %1073 = vsyncpa [#allocation4], 1
    %1074 = vsyncpa [#allocation15], 1

</llo_original>
